<compile_context>
chip_gen: v5e
topology: v5e:2x2
jax: 0.10.0
libtpu: 0.0.40
codegen_flags: <defaults>
</compile_context>

<pallas_src>
import functools
import numpy as np
import jax
import jax.numpy as jnp
from jax.experimental import pallas as pl
from jax.experimental.pallas import tpu as pltpu

CARDINALITY = 64
# (num_blocks, bottleneck width, out_channels, stage stride) for ResNeXt-101 64x4d
STAGES = [(3, 256, 256, 1), (4, 512, 512, 2), (23, 1024, 1024, 2), (3, 2048, 2048, 2)]


def _default_vmem_limit():
    # v7x has only 64 MiB VMEM per TensorCore (v5e/v6e: 128 MiB); leave headroom for
    # double-buffering instead of hard-coding 100 MiB.
    try:
        cap = int(pltpu.get_tpu_info().vmem_capacity_bytes)
        return max(32 * 1024 * 1024, min((cap * 3) // 4, 96 * 1024 * 1024))
    except Exception:
        return 48 * 1024 * 1024


_VMEM_LIMIT = _default_vmem_limit()


def _compiler_params(semantics):
    return pltpu.CompilerParams(dimension_semantics=semantics,
                                vmem_limit_bytes=_VMEM_LIMIT)


def _choose_m_tile(m, cap=512):
    """Largest multiple-of-8 tile <= cap that divides m exactly (so M is never padded)."""
    if m <= cap:
        return m
    t = (cap // 8) * 8
    while t >= 8:
        if m % t == 0:
            return t
        t -= 8
    return m


def _choose_nk_tile(d, cap=512):
    if d <= cap:
        return d
    for t in (512, 384, 256, 128):
        if d % t == 0:
            return t
    return d


# --------------------------------------------------------------------------------------
# Fused matmul (+ folded BN + optional residual + optional ReLU) kernels
# --------------------------------------------------------------------------------------
def _mm_bn_kernel(a_ref, w_ref, s_ref, t_ref, o_ref, acc_ref, *, relu):
    @pl.when(pl.program_id(2) == 0)
    def _init():
        acc_ref[...] = jnp.zeros_like(acc_ref)

    acc_ref[...] += jnp.dot(a_ref[...], w_ref[...], preferred_element_type=jnp.float32)

    @pl.when(pl.program_id(2) == pl.num_programs(2) - 1)
    def _done():
        y = acc_ref[...] * s_ref[...] + t_ref[...]
        if relu:
            y = jnp.maximum(y, 0.0)
        o_ref[...] = y.astype(o_ref.dtype)


def _mm_bn_res_kernel(a_ref, w_ref, s_ref, t_ref, r_ref, o_ref, acc_ref, *, relu):
    @pl.when(pl.program_id(2) == 0)
    def _init():
        acc_ref[...] = jnp.zeros_like(acc_ref)

    acc_ref[...] += jnp.dot(a_ref[...], w_ref[...], preferred_element_type=jnp.float32)

    @pl.when(pl.program_id(2) == pl.num_programs(2) - 1)
    def _done():
        y = acc_ref[...] * s_ref[...] + t_ref[...] + r_ref[...].astype(jnp.float32)
        if relu:
            y = jnp.maximum(y, 0.0)
        o_ref[...] = y.astype(o_ref.dtype)


def _matmul_bn(a, w, scale, shift, *, relu, residual=None, out_dtype=jnp.bfloat16):
    """out = [relu]((a @ w) * scale + shift [+ residual]); a:(M,K) bf16, w:(K,N) bf16."""
    m, k = a.shape
    kw, n = w.shape
    assert k == kw
    tm = _choose_m_tile(m)
    tn = _choose_nk_tile(n)
    tk = _choose_nk_tile(k)
    grid = (m // tm, n // tn, k // tk)
    in_specs = [
        pl.BlockSpec((tm, tk), lambda i, j, l: (i, l)),
        pl.BlockSpec((tk, tn), lambda i, j, l: (l, j)),
        pl.BlockSpec((1, tn), lambda i, j, l: (0, j)),
        pl.BlockSpec((1, tn), lambda i, j, l: (0, j)),
    ]
    args = [a, w, scale.reshape(1, n), shift.reshape(1, n)]
    if residual is None:
        kernel = functools.partial(_mm_bn_kernel, relu=relu)
    else:
        in_specs.append(pl.BlockSpec((tm, tn), lambda i, j, l: (i, j)))
        args.append(residual)
        kernel = functools.partial(_mm_bn_res_kernel, relu=relu)
    return pl.pallas_call(
        kernel,
        out_shape=jax.ShapeDtypeStruct((m, n), out_dtype),
        grid=grid,
        in_specs=in_specs,
        out_specs=pl.BlockSpec((tm, tn), lambda i, j, l: (i, j)),
        scratch_shapes=[pltpu.VMEM((tm, tn), jnp.float32)],
        compiler_params=_compiler_params(("parallel", "parallel", "arbitrary")),
    )(*args)


def conv1x1_bn(x, w, scale, shift, *, relu, stride=1, residual=None):
    """Pointwise conv + folded BN (+ residual, + ReLU). x:(N,H,W,Cin) bf16, w:(Cin,Cout) bf16."""
    if stride > 1:
        x = x[:, ::stride, ::stride, :]
    n, h, wdt, cin = x.shape
    m = n * h * wdt
    a = x.reshape(m, cin)
    r = residual.reshape(m, residual.shape[-1]) if residual is not None else None
    y = _matmul_bn(a, w, scale, shift, relu=relu, residual=r)
    return y.reshape(n, h, wdt, w.shape[1])


# --------------------------------------------------------------------------------------
# Grouped 3x3 conv kernels (cardinality 64) — lane-dense 128-channel slabs
# --------------------------------------------------------------------------------------
def _gconv_s1_kernel(x_ref, w_ref, s_ref, t_ref, o_ref, *, wp, l):
    # x_ref: ((H+3)*(W+2), 128) flattened padded rows; each tap is a contiguous shifted slice.
    acc = jnp.zeros((l, 128), jnp.float32)
    for t in range(9):
        di, dj = divmod(t, 3)
        off = di * wp + dj
        acc = acc + jnp.dot(x_ref[off:off + l, :], w_ref[t],
                            preferred_element_type=jnp.float32)
    y = acc * s_ref[...] + t_ref[...]
    o_ref[...] = jnp.maximum(y, 0.0).astype(o_ref.dtype)


def gconv3x3_s1_bn(x, w_taps, scale, shift):
    """Grouped 3x3 conv (stride 1, pad 1, groups=64) + folded BN + ReLU, without im2col.

    w_taps: (num_slabs*9, 128, 128) per-slab block-diagonal tap matrices (built at init).
    The padded map is flattened to rows of width W+2; every output row carries 2 junk
    columns (row-wrap) that are dropped afterwards.
    """
    n, h, w, c = x.shape
    wp = w + 2
    # extra bottom pad row keeps the last tap of the (discarded) junk columns in bounds
    xp = jnp.pad(x, ((0, 0), (1, 2), (1, 1), (0, 0)))
    xf = xp.reshape(n, (h + 3) * wp, c)
    l = h * wp
    num_cb = c // 128
    y = pl.pallas_call(
        functools.partial(_gconv_s1_kernel, wp=wp, l=l),
        out_shape=jax.ShapeDtypeStruct((n, l, c), jnp.bfloat16),
        grid=(n, num_cb),
        in_specs=[
            pl.BlockSpec((None, (h + 3) * wp, 128), lambda b, j: (b, 0, j)),
            pl.BlockSpec((9, 128, 128), lambda b, j: (j, 0, 0)),
            pl.BlockSpec((1, 128), lambda b, j: (0, j)),
            pl.BlockSpec((1, 128), lambda b, j: (0, j)),
        ],
        out_specs=pl.BlockSpec((None, l, 128), lambda b, j: (b, 0, j)),
        compiler_params=_compiler_params(("parallel", "parallel")),
    )(xf, w_taps, scale.reshape(1, c), shift.reshape(1, c))
    return y.reshape(n, h, wp, c)[:, :, :w, :]


def _gmm_bn_kernel(a_ref, w_ref, s_ref, t_ref, o_ref, *, relu):
    y = jnp.dot(a_ref[...], w_ref[...], preferred_element_type=jnp.float32)
    y = y * s_ref[...] + t_ref[...]
    if relu:
        y = jnp.maximum(y, 0.0)
    o_ref[...] = y.astype(o_ref.dtype)


def gconv3x3_s2_bn(x, w_mat, scale, shift, *, stride):
    """Strided grouped 3x3 conv (first block of stages 2-4): small im2col with a
    (channel, tap)-major K layout + per-slab (9*128 x 128) block-diagonal matmul,
    fused with BN + ReLU."""
    n, h, w, c = x.shape
    oh = (h + 2 - 3) // stride + 1
    ow = (w + 2 - 3) // stride + 1
    xp = jnp.pad(x, ((0, 0), (1, 1), (1, 1), (0, 0)))
    cols = []
    for i in range(3):
        for j in range(3):
            cols.append(jax.lax.slice(
                xp, (0, i, j, 0),
                (n, i + (oh - 1) * stride + 1, j + (ow - 1) * stride + 1, c),
                (1, stride, stride, 1)))
    patches = jnp.stack(cols, axis=-1).reshape(n * oh * ow, c * 9)
    m = n * oh * ow
    tm = _choose_m_tile(m)
    num_cb = c // 128
    y = pl.pallas_call(
        functools.partial(_gmm_bn_kernel, relu=True),
        out_shape=jax.ShapeDtypeStruct((m, c), jnp.bfloat16),
        grid=(m // tm, num_cb),
        in_specs=[
            pl.BlockSpec((tm, 9 * 128), lambda i, j: (i, j)),
            pl.BlockSpec((9 * 128, 128), lambda i, j: (j, 0)),
            pl.BlockSpec((1, 128), lambda i, j: (0, j)),
            pl.BlockSpec((1, 128), lambda i, j: (0, j)),
        ],
        out_specs=pl.BlockSpec((tm, 128), lambda i, j: (i, j)),
        compiler_params=_compiler_params(("parallel", "parallel")),
    )(patches, w_mat, scale.reshape(1, c), shift.reshape(1, c))
    return y.reshape(n, oh, ow, c)


# --------------------------------------------------------------------------------------
# Stem, pooling and classifier
# --------------------------------------------------------------------------------------
@jax.jit
def stem_conv_bn(x_nchw, w_mat, scale, shift):
    """7x7/2 conv (pad 3) + folded BN + ReLU; input is the PyTorch-style NCHW image."""
    x = jnp.transpose(x_nchw, (0, 2, 3, 1)).astype(jnp.bfloat16)
    n, h, w, c = x.shape
    oh = (h + 6 - 7) // 2 + 1
    ow = (w + 6 - 7) // 2 + 1
    xp = jnp.pad(x, ((0, 0), (3, 3), (3, 3), (0, 0)))
    cols = []
    for i in range(7):
        for j in range(7):
            cols.append(jax.lax.slice(
                xp, (0, i, j, 0),
                (n, i + (oh - 1) * 2 + 1, j + (ow - 1) * 2 + 1, c),
                (1, 2, 2, 1)))
    patches = jnp.stack(cols, axis=-1).reshape(n * oh * ow, c * 49)
    y = _matmul_bn(patches, w_mat, scale, shift, relu=True)
    return y.reshape(n, oh, ow, w_mat.shape[1])


def _max9_kernel(t0, t1, t2, t3, t4, t5, t6, t7, t8, o_ref):
    m = jnp.maximum(t0[...], t1[...])
    m = jnp.maximum(m, t2[...])
    m = jnp.maximum(m, t3[...])
    m = jnp.maximum(m, t4[...])
    m = jnp.maximum(m, t5[...])
    m = jnp.maximum(m, t6[...])
    m = jnp.maximum(m, t7[...])
    m = jnp.maximum(m, t8[...])
    o_ref[...] = m


@jax.jit
def maxpool_3x3_s2_p1(x):
    """nn.MaxPool2d((3,3),(2,2),(1,1)) on NHWC input (9 shifted views, one max kernel)."""
    n, h, w, c = x.shape
    oh = (h + 2 - 3) // 2 + 1
    ow = (w + 2 - 3) // 2 + 1
    xp = jnp.pad(x, ((0, 0), (1, 1), (1, 1), (0, 0)), constant_values=-jnp.inf)
    taps = []
    for i in range(3):
        for j in range(3):
            taps.append(jax.lax.slice(
                xp, (0, i, j, 0),
                (n, i + (oh - 1) * 2 + 1, j + (ow - 1) * 2 + 1, c),
                (1, 2, 2, 1)).reshape(n * oh * ow, c))
    m = n * oh * ow
    tm = _choose_m_tile(m)
    out = pl.pallas_call(
        _max9_kernel,
        out_shape=jax.ShapeDtypeStruct((m, c), x.dtype),
        grid=(m // tm,),
        in_specs=[pl.BlockSpec((tm, c), lambda i: (i, 0)) for _ in range(9)],
        out_specs=pl.BlockSpec((tm, c), lambda i: (i, 0)),
        compiler_params=_compiler_params(("parallel",)),
    )(*taps)
    return out.reshape(n, oh, ow, c)


def _avgpool_kernel(x_ref, o_ref, *, inv):
    o_ref[...] = jnp.sum(x_ref[...].astype(jnp.float32), axis=0, keepdims=True) * inv


@jax.jit
def avgpool_7x7(x):
    """nn.AvgPool2d((7,7),(1,1)) on an exactly 7x7 NHWC feature map -> (N, C) f32."""
    n, h, w, c = x.shape
    xr = x.reshape(n, h * w, c)
    tc = 512 if c % 512 == 0 else c
    return pl.pallas_call(
        functools.partial(_avgpool_kernel, inv=1.0 / float(h * w)),
        out_shape=jax.ShapeDtypeStruct((n, c), jnp.float32),
        grid=(n, c // tc),
        in_specs=[pl.BlockSpec((None, h * w, tc), lambda b, j: (b, 0, j))],
        out_specs=pl.BlockSpec((1, tc), lambda b, j: (b, j)),
        compiler_params=_compiler_params(("parallel", "parallel")),
    )(xr)


@jax.jit
def linear_fc(pooled, w_mat, bias):
    """x @ W^T + b with the bias applied in the matmul epilogue (scale=1, shift=b)."""
    ones = jnp.ones((w_mat.shape[1],), jnp.float32)
    return _matmul_bn(pooled.astype(jnp.bfloat16), w_mat, ones, bias,
                      relu=False, out_dtype=jnp.float32)


# --------------------------------------------------------------------------------------
# Bottleneck block
# --------------------------------------------------------------------------------------
@functools.partial(jax.jit, static_argnames=("stride",))
def _bottleneck(x, blk, *, stride):
    out = conv1x1_bn(x, blk["w1"], blk["s1"], blk["t1"], relu=True)
    if stride == 1:
        out = gconv3x3_s1_bn(out, blk["w2"], blk["s2"], blk["t2"])
    else:
        out = gconv3x3_s2_bn(out, blk["w2"], blk["s2"], blk["t2"], stride=stride)
    if "wd" in blk:
        sc = conv1x1_bn(x, blk["wd"], blk["sd"], blk["td"], relu=False, stride=stride)
    else:
        sc = x
    # bn3 + residual add + ReLU fused into conv3's matmul epilogue
    return conv1x1_bn(out, blk["w3"], blk["s3"], blk["t3"], relu=True, residual=sc)


# --------------------------------------------------------------------------------------
# Deterministic parameter construction + one-time layout preprocessing
# --------------------------------------------------------------------------------------
class KeyGen:
    def __init__(self, key):
        self._key = key

    def __call__(self):
        self._key, sub = jax.random.split(self._key)
        return sub


def make_conv(kg, cout, cin_g, kh, kw):
    fan_in = cin_g * kh * kw
    return jax.random.normal(kg(), (cout, cin_g, kh, kw), jnp.float32) * float(np.sqrt(2.0 / fan_in))


def make_bn(kg, c):
    gamma = 1.0 + 0.1 * jax.random.normal(kg(), (c,), jnp.float32)
    beta = 0.1 * jax.random.normal(kg(), (c,), jnp.float32)
    mean = 0.05 * jax.random.normal(kg(), (c,), jnp.float32)
    var = 1.0 + 0.1 * jax.random.uniform(kg(), (c,), jnp.float32)
    eps = 1e-5
    scale = gamma / jnp.sqrt(var + eps)          # folded inference BatchNorm
    shift = beta - mean * scale
    return scale, shift


def _prep_conv1x1(w):
    # (Cout, Cin, 1, 1) -> (Cin, Cout) bf16
    return jnp.asarray(w[:, :, 0, 0].T, jnp.bfloat16)


def _prep_conv_dense(w):
    # (Cout, Cin, kh, kw) -> (Cin*kh*kw, Cout) bf16 with K ordered (channel, tap)
    cout, cin, kh, kw = w.shape
    return jnp.asarray(jnp.transpose(w, (1, 2, 3, 0)).reshape(cin * kh * kw, cout), jnp.bfloat16)


def _prep_gconv(w, stride):
    """Expand grouped 3x3 weights into per-128-channel-slab block-diagonal operands."""
    cout, cg = w.shape[0], w.shape[1]
    g = cout // cg
    num_cb = cout // 128
    gp = 128 // cg
    assert cout % 128 == 0 and 128 % cg == 0
    # wg[grp, tap, ci, co] = w[grp*cg + co, ci, ti, tj]
    wg = jnp.transpose(w.reshape(g, cg, cg, 3, 3), (0, 3, 4, 2, 1)).reshape(g, 9, cg, cg)
    blocks = wg.reshape(num_cb, gp, 9, cg, cg)
    eye = jnp.eye(gp, dtype=w.dtype)
    if stride == 1:
        # (num_cb*9, 128, 128): per-slab, per-tap block-diagonal matrices
        taps = jnp.einsum("bgtic,gh->btgihc", blocks, eye).reshape(num_cb * 9, 128, 128)
        return jnp.asarray(taps, jnp.bfloat16)
    # (num_cb*9*128, 128): per-slab im2col weight, K ordered (channel, tap)
    mat = jnp.einsum("bgtic,gh->bgithc", blocks, eye).reshape(num_cb * 9 * 128, 128)
    return jnp.asarray(mat, jnp.bfloat16)


def init_resnext101_64x4d(key, num_classes=1000):
    kg = KeyGen(key)
    stem_w = make_conv(kg, 64, 3, 7, 7)
    stem_scale, stem_shift = make_bn(kg, 64)
    params = {
        "stem_w": _prep_conv_dense(stem_w),
        "stem_scale": stem_scale,
        "stem_shift": stem_shift,
        "blocks": [],
    }
    in_ch = 64
    for (n, width, out_ch, stage_stride) in STAGES:
        for b in range(n):
            s = stage_stride if b == 0 else 1
            blk = {}
            blk["w1"] = _prep_conv1x1(make_conv(kg, width, in_ch, 1, 1))
            blk["s1"], blk["t1"] = make_bn(kg, width)
            blk["w2"] = _prep_gconv(make_conv(kg, width, width // CARDINALITY, 3, 3), s)
            blk["s2"], blk["t2"] = make_bn(kg, width)
            blk["w3"] = _prep_conv1x1(make_conv(kg, out_ch, width, 1, 1))
            blk["s3"], blk["t3"] = make_bn(kg, out_ch)
            if s != 1 or in_ch != out_ch:
                blk["wd"] = _prep_conv1x1(make_conv(kg, out_ch, in_ch, 1, 1))
                blk["sd"], blk["td"] = make_bn(kg, out_ch)
            params["blocks"].append(blk)
            in_ch = out_ch
    fc_w = jax.random.normal(kg(), (num_classes, 2048), jnp.float32) * float(np.sqrt(1.0 / 2048))
    params["fc_w"] = jnp.asarray(fc_w.T, jnp.bfloat16)
    params["fc_b"] = 0.01 * jax.random.normal(kg(), (num_classes,), jnp.float32)
    return params


# --------------------------------------------------------------------------------------
# Forward pass (== ResNeXt101_64x4d.forward: features -> avg_pool(7,7) -> view -> linear)
# --------------------------------------------------------------------------------------
def resnext101_64x4d_forward(params, x_nchw):
    x = stem_conv_bn(x_nchw, params["stem_w"], params["stem_scale"], params["stem_shift"])
    x = maxpool_3x3_s2_p1(x)
    idx = 0
    for (n, _width, _out_ch, stage_stride) in STAGES:
        for b in range(n):
            s = stage_stride if b == 0 else 1
            x = _bottleneck(x, params["blocks"][idx], stride=s)
            idx += 1
    pooled = avgpool_7x7(x)                              # (N, 2048) f32
    return linear_fc(pooled, params["fc_w"], params["fc_b"])


if __name__ == "__main__":
    key = jax.random.PRNGKey(0)
    pkey, xkey = jax.random.split(key)
    num_classes = 1000
    params = init_resnext101_64x4d(pkey, num_classes=num_classes)
    # batch=1; 224x224 spatial is required because the fixed 7x7 AvgPool head implies a
    # 7x7x2048 final feature map (224 / 32 = 7).
    x = jax.random.normal(xkey, (1, 3, 224, 224), jnp.float32)
    logits = resnext101_64x4d_forward(params, x)
    logits = jax.block_until_ready(logits)
    assert logits.shape == (1, num_classes), logits.shape
    assert bool(jnp.all(jnp.isfinite(logits)))
    print("KERNEL_OK")
</pallas_src>

<mosaic_0001>
module attributes {stable_mosaic.version = 11 : i64} {
  func.func @_mm_bn_kernel(%arg0: i32, %arg1: i32, %arg2: i32, %arg3: memref<448x147xbf16, #tpu.memory_space<vmem>>, %arg4: memref<147x64xbf16, #tpu.memory_space<vmem>>, %arg5: memref<1x64xf32, #tpu.memory_space<vmem>>, %arg6: memref<1x64xf32, #tpu.memory_space<vmem>>, %arg7: memref<448x64xbf16, #tpu.memory_space<vmem>>, %arg8: memref<448x64xf32, #tpu.memory_space<vmem>>) attributes {dimension_semantics = [#tpu.dimension_semantics<parallel>, #tpu.dimension_semantics<parallel>, #tpu.dimension_semantics<arbitrary>], iteration_bounds = array<i64: 28, 1, 1>, scalar_prefetch = 0 : i64, scratch_operands = 1 : i64, tpu.core_type = #tpu.core_type<tc>, window_params = [{transform_indices = @transform_0, window_bounds = array<i64: 448, 147>}, {transform_indices = @transform_1, window_bounds = array<i64: 147, 64>}, {transform_indices = @transform_2, window_bounds = array<i64: 1, 64>}, {transform_indices = @transform_3, window_bounds = array<i64: 1, 64>}, {transform_indices = @transform_4, window_bounds = array<i64: 448, 64>}]} {
    %c0_i32 = arith.constant 0 : i32
    %0 = arith.cmpi eq, %arg2, %c0_i32 : i32
    %1 = arith.extui %0 : i1 to i32
    %c0_i32_0 = arith.constant 0 : i32
    %2 = arith.cmpi ne, %1, %c0_i32_0 : i32
    scf.if %2 {
      %cst_10 = arith.constant 0.000000e+00 : f32
      %12 = vector.broadcast %cst_10 : f32 to vector<448x64xf32>
      %c0_11 = arith.constant 0 : index
      %c0_12 = arith.constant 0 : index
      %13 = vector.load %arg8[%c0_11, %c0_12] : memref<448x64xf32, #tpu.memory_space<vmem>>, vector<448x64xf32>
      tpu.vector_store %arg8[%c0_11, %c0_12], %12 {strides = array<i32>} : memref<448x64xf32, #tpu.memory_space<vmem>>, vector<448x64xf32>,
    } else {
    }
    %c0 = arith.constant 0 : index
    %c0_1 = arith.constant 0 : index
    %3 = vector.load %arg8[%c0, %c0_1] : memref<448x64xf32, #tpu.memory_space<vmem>>, vector<448x64xf32>
    %c0_2 = arith.constant 0 : index
    %c0_3 = arith.constant 0 : index
    %4 = vector.load %arg3[%c0_2, %c0_3] : memref<448x147xbf16, #tpu.memory_space<vmem>>, vector<448x147xbf16>
    %c0_4 = arith.constant 0 : index
    %c0_5 = arith.constant 0 : index
    %5 = vector.load %arg4[%c0_4, %c0_5] : memref<147x64xbf16, #tpu.memory_space<vmem>>, vector<147x64xbf16>
    %cst = arith.constant dense<0.000000e+00> : vector<448x64xf32>
    %6 = tpu.matmul %4, %5, %cst {dimension_numbers = #tpu.dot_dimension_numbers<[1], [0], [0], [1], [0, 0, 1, 1], [], []>} : vector<448x147xbf16>, vector<147x64xbf16>, vector<448x64xf32> -> vector<448x64xf32>
    %7 = arith.addf %3, %6 : vector<448x64xf32>
    %c0_6 = arith.constant 0 : index
    %c0_7 = arith.constant 0 : index
    %8 = vector.load %arg8[%c0_6, %c0_7] : memref<448x64xf32, #tpu.memory_space<vmem>>, vector<448x64xf32>
    tpu.vector_store %arg8[%c0_6, %c0_7], %7 {strides = array<i32>} : memref<448x64xf32, #tpu.memory_space<vmem>>, vector<448x64xf32>,
    %c0_i32_8 = arith.constant 0 : i32
    %9 = arith.cmpi eq, %arg2, %c0_i32_8 : i32
    %10 = arith.extui %9 : i1 to i32
    %c0_i32_9 = arith.constant 0 : i32
    %11 = arith.cmpi ne, %10, %c0_i32_9 : i32
    scf.if %11 {
      %c0_10 = arith.constant 0 : index
      %c0_11 = arith.constant 0 : index
      %12 = vector.load %arg8[%c0_10, %c0_11] : memref<448x64xf32, #tpu.memory_space<vmem>>, vector<448x64xf32>
      %c0_12 = arith.constant 0 : index
      %c0_13 = arith.constant 0 : index
      %13 = vector.load %arg5[%c0_12, %c0_13] : memref<1x64xf32, #tpu.memory_space<vmem>>, vector<1x64xf32>
      %14 = vector.broadcast %13 : vector<1x64xf32> to vector<448x64xf32>
      %15 = arith.mulf %12, %14 : vector<448x64xf32>
      %c0_14 = arith.constant 0 : index
      %c0_15 = arith.constant 0 : index
      %16 = vector.load %arg6[%c0_14, %c0_15] : memref<1x64xf32, #tpu.memory_space<vmem>>, vector<1x64xf32>
      %17 = vector.broadcast %16 : vector<1x64xf32> to vector<448x64xf32>
      %18 = arith.addf %15, %17 : vector<448x64xf32>
      %cst_16 = arith.constant 0.000000e+00 : f32
      %19 = vector.broadcast %cst_16 : f32 to vector<448x64xf32>
      %20 = arith.maximumf %18, %19 : vector<448x64xf32>
      %21 = arith.truncf %20 : vector<448x64xf32> to vector<448x64xbf16>
      %c0_17 = arith.constant 0 : index
      %c0_18 = arith.constant 0 : index
      %22 = vector.load %arg7[%c0_17, %c0_18] : memref<448x64xbf16, #tpu.memory_space<vmem>>, vector<448x64xbf16>
      tpu.vector_store %arg7[%c0_17, %c0_18], %21 {strides = array<i32>} : memref<448x64xbf16, #tpu.memory_space<vmem>>, vector<448x64xbf16>,
    } else {
    }
    return
  }
  func.func @transform_0(%arg0: i32, %arg1: i32, %arg2: i32) -> (i32, i32) {
    %c0_i32 = arith.constant 0 : i32
    return %arg0, %arg2 : i32, i32
  }
  func.func @transform_1(%arg0: i32, %arg1: i32, %arg2: i32) -> (i32, i32) {
    %c0_i32 = arith.constant 0 : i32
    return %arg2, %arg1 : i32, i32
  }
  func.func @transform_2(%arg0: i32, %arg1: i32, %arg2: i32) -> (i32, i32) {
    %c0_i32 = arith.constant 0 : i32
    %c0_i32_0 = arith.constant 0 : i32
    return %c0_i32, %arg1 : i32, i32
  }
  func.func @transform_3(%arg0: i32, %arg1: i32, %arg2: i32) -> (i32, i32) {
    %c0_i32 = arith.constant 0 : i32
    %c0_i32_0 = arith.constant 0 : i32
    return %c0_i32, %arg1 : i32, i32
  }
  func.func @transform_4(%arg0: i32, %arg1: i32, %arg2: i32) -> (i32, i32) {
    %c0_i32 = arith.constant 0 : i32
    return %arg0, %arg1 : i32, i32
  }
}

</mosaic_0001>

<llo_original>
// kernel: stem_conv_bn.1
$region0: #{stem_conv_bn.1}
  #allocation0 [shape = 'u32[]', space=smem, size = 0x4, offset = 0x4, fixed_abs, tag = 'smem constant byte address 0x4 - core index']
  #allocation1 [shape = 'u32[72,128]{1,0:T(1,128)}', space=vmem, size = 0x9000, scoped, tag = 'internal scratch']
  #allocation2 [shape = 'f32[448,64]{1,0:T(8,128)}', space=vmem, size = 0x38000, scoped, tag = 'scratch operand']
  %s0 = inlined_call_operand.vmem [shape: bf16[12544,147], index: 0, kind: input, shape index: {}]
  %s1 = inlined_call_operand.vmem [shape: bf16[147,64], index: 1, kind: input, shape index: {}]
  %s2 = inlined_call_operand.vmem [shape: f32[1,64], index: 2, kind: input, shape index: {}]
  %s3 = inlined_call_operand.vmem [shape: f32[1,64], index: 3, kind: input, shape index: {}]
  %s4 = inlined_call_operand.vmem [shape: bf16[12544,64], index: 4, kind: output, shape index: {}]
  %s5 = sld [smem:[#allocation0]]
  $region57: #{stem_conv_bn.1} parent=0
    _
  %s7 = ssub.s32 1, %s5
  %s8 = scalar_select 0, %s7, %s5
  loop: start=0, step=1, limit=30
  $region2: #{stem_conv_bn.1} parent=0 // loop_pre_header
    _
  $region3: #{stem_conv_bn.1} parent=0 // loop_header
    %s10 = sphi 0, %s14
    %p11 = scmp.ge.s32.totalorder %s10, 30
    %s17 = sphi 0, %s36
    %s18 = sphi 0, %s32
    %s19 = sphi 0, %s28
    %s20 = sphi 0, %s17
    %s21 = sphi 0, %s18
    %s22 = sphi 0, %s19
    %s23 = sphi 0, %s20
    %s24 = sphi 0, %s21
    %s25 = sphi 0, %s22
    %s41 = sphi 0, %s43
    %s44 = sphi 0, %s41
    %s45 = sphi 0, %s44
    %s61 = sphi 0, %s45
    %s69 = sphi 0, %s71
    %s72 = sphi 0, %s69
    %s73 = sphi 0, %s72
    %s89 = sphi 0, %s73
    %s95 = sphi 0, %s97
    %s98 = sphi 0, %s95
    %s99 = sphi 0, %s98
    %s115 = sphi 0, %s99
    %s121 = sphi 0, %s123
    %s124 = sphi 0, %s121
    %s125 = sphi 0, %s124
    %s141 = sphi 0, %s125
    %s149 = sphi 0, %s151
    %s152 = sphi 0, %s149
    %s153 = sphi 0, %s152
    %s169 = sphi 0, %s153
  $region4: #{stem_conv_bn.1} parent=0 // loop_header_branch
    %13 = sbr.rel (%p11) target = $region8
  $region5: #{stem_conv_bn.1} parent=0 // loop_body
    %s15 = ssub.s32 %s10, 1
    %s16 = ssub.s32 %s10, 2
    %s26 = sadd.s32 1, %s19
    %p27 = scmp.ge.s32.totalorder %s26, 1
    %s28 = scalar_select %p27, 0, %s26
    %s29 = sadd.s32 1, %s18
    %s30 = scalar_select %p27, %s29, %s18
    %p31 = scmp.ge.s32.totalorder %s30, 1
    %s32 = scalar_select %p31, 0, %s30
    %s33 = sadd.s32 1, %s17
    %s34 = scalar_select %p31, %s33, %s17
    %p35 = scmp.ge.s32.totalorder %s34, 28
    %s36 = scalar_select %p35, 0, %s34
    %s37 = ssub.s32 %s17, %s36
    %s38 = ssub.s32 %s19, %s28
    %s39 = sor.u32 %s37, %s38
    %p40 = scmp.eq.s32.totalorder %s39, 0
    %s42 = sadd.s32 %s41, 1
    %s43 = scalar_select %p40, %s41, %s42
    %p46 = pneg %p40
    %p47 = scmp.eq.s32.totalorder %s10, 27
    %p48 = por %p46, %p47
    %p49 = scmp.ne.s32.totalorder %s41, %s44
    %p50 = scmp.eq.s32.totalorder %s10, 0
    %p51 = por %p49, %p50
    %p52 = scmp.ne.s32.totalorder %s41, %s44
    %p53 = scmp.eq.s32.totalorder %s15, 27
    %p54 = por %p52, %p53
    %p55 = scmp.ne.s32.totalorder %s44, %s45
    %p56 = scmp.eq.s32.totalorder %s15, 0
    %p57 = por %p55, %p56
    %p58 = scmp.ne.s32.totalorder %s44, %s45
    %p59 = scmp.eq.s32.totalorder %s16, 27
    %p60 = por %p58, %p59
    %p62 = scmp.ne.s32.totalorder %s45, %s61
    %p63 = scmp.eq.s32.totalorder %s16, 0
    %p64 = por %p62, %p63
    %s65 = ssub.s32 %s19, %s28
    %s66 = ssub.s32 %s18, %s32
    %s67 = sor.u32 %s65, %s66
    %p68 = scmp.eq.s32.totalorder %s67, 0
    %s70 = sadd.s32 %s69, 1
    %s71 = scalar_select %p68, %s69, %s70
    %p74 = pneg %p68
    %p75 = scmp.eq.s32.totalorder %s10, 27
    %p76 = por %p74, %p75
    %p77 = scmp.ne.s32.totalorder %s69, %s72
    %p78 = scmp.eq.s32.totalorder %s10, 0
    %p79 = por %p77, %p78
    %p80 = scmp.ne.s32.totalorder %s69, %s72
    %p81 = scmp.eq.s32.totalorder %s15, 27
    %p82 = por %p80, %p81
    %p83 = scmp.ne.s32.totalorder %s72, %s73
    %p84 = scmp.eq.s32.totalorder %s15, 0
    %p85 = por %p83, %p84
    %p86 = scmp.ne.s32.totalorder %s72, %s73
    %p87 = scmp.eq.s32.totalorder %s16, 27
    %p88 = por %p86, %p87
    %p90 = scmp.ne.s32.totalorder %s73, %s89
    %p91 = scmp.eq.s32.totalorder %s16, 0
    %p92 = por %p90, %p91
    %s93 = ssub.s32 %s18, %s32
    %p94 = scmp.eq.s32.totalorder %s93, 0
    %s96 = sadd.s32 %s95, 1
    %s97 = scalar_select %p94, %s95, %s96
    %p100 = pneg %p94
    %p101 = scmp.eq.s32.totalorder %s10, 27
    %p102 = por %p100, %p101
    %p103 = scmp.ne.s32.totalorder %s95, %s98
    %p104 = scmp.eq.s32.totalorder %s10, 0
    %p105 = por %p103, %p104
    %p106 = scmp.ne.s32.totalorder %s95, %s98
    %p107 = scmp.eq.s32.totalorder %s15, 27
    %p108 = por %p106, %p107
    %p109 = scmp.ne.s32.totalorder %s98, %s99
    %p110 = scmp.eq.s32.totalorder %s15, 0
    %p111 = por %p109, %p110
    %p112 = scmp.ne.s32.totalorder %s98, %s99
    %p113 = scmp.eq.s32.totalorder %s16, 27
    %p114 = por %p112, %p113
    %p116 = scmp.ne.s32.totalorder %s99, %s115
    %p117 = scmp.eq.s32.totalorder %s16, 0
    %p118 = por %p116, %p117
    %s119 = ssub.s32 %s18, %s32
    %p120 = scmp.eq.s32.totalorder %s119, 0
    %s122 = sadd.s32 %s121, 1
    %s123 = scalar_select %p120, %s121, %s122
    %p126 = pneg %p120
    %p127 = scmp.eq.s32.totalorder %s10, 27
    %p128 = por %p126, %p127
    %p129 = scmp.ne.s32.totalorder %s121, %s124
    %p130 = scmp.eq.s32.totalorder %s10, 0
    %p131 = por %p129, %p130
    %p132 = scmp.ne.s32.totalorder %s121, %s124
    %p133 = scmp.eq.s32.totalorder %s15, 27
    %p134 = por %p132, %p133
    %p135 = scmp.ne.s32.totalorder %s124, %s125
    %p136 = scmp.eq.s32.totalorder %s15, 0
    %p137 = por %p135, %p136
    %p138 = scmp.ne.s32.totalorder %s124, %s125
    %p139 = scmp.eq.s32.totalorder %s16, 27
    %p140 = por %p138, %p139
    %p142 = scmp.ne.s32.totalorder %s125, %s141
    %p143 = scmp.eq.s32.totalorder %s16, 0
    %p144 = por %p142, %p143
    %s145 = ssub.s32 %s17, %s36
    %s146 = ssub.s32 %s18, %s32
    %s147 = sor.u32 %s145, %s146
    %p148 = scmp.eq.s32.totalorder %s147, 0
    %s150 = sadd.s32 %s149, 1
    %s151 = scalar_select %p148, %s149, %s150
    %p154 = pneg %p148
    %p155 = scmp.eq.s32.totalorder %s10, 27
    %p156 = por %p154, %p155
    %p157 = scmp.ne.s32.totalorder %s149, %s152
    %p158 = scmp.eq.s32.totalorder %s10, 0
    %p159 = por %p157, %p158
    %p160 = scmp.ne.s32.totalorder %s149, %s152
    %p161 = scmp.eq.s32.totalorder %s15, 27
    %p162 = por %p160, %p161
    %p163 = scmp.ne.s32.totalorder %s152, %s153
    %p164 = scmp.eq.s32.totalorder %s15, 0
    %p165 = por %p163, %p164
    %p166 = scmp.ne.s32.totalorder %s152, %s153
    %p167 = scmp.eq.s32.totalorder %s16, 27
    %p168 = por %p166, %p167
    %p170 = scmp.ne.s32.totalorder %s153, %s169
    %p171 = scmp.eq.s32.totalorder %s16, 0
    %p172 = por %p170, %p171
    %p173 = scmp.le.s32.totalorder 1, %s10
    %p174 = scmp.lt.s32.totalorder %s10, 29
    %p175 = pnand %p173, %p174
    %p176 = pneg %p175
    // Predicated region
    $region9: #{stem_conv_bn.1} parent=5 // pred_check
      _
    $region10: #{stem_conv_bn.1} parent=5 // pred_check_branch
      %178 = sbr.rel (%p175) target = $region12
    $region11: #{stem_conv_bn.1} parent=5 // pred_region
      %s179 = ssub.s32 %s10, 1
      // Predicated region
      $region13: #{stem_conv_bn.1} parent=11 // pred_check
        %p180 = pneg %p85
      $region14: #{stem_conv_bn.1} parent=11 // pred_check_branch
        %182 = sbr.rel (%p180) target = $region16
      $region15: #{stem_conv_bn.1} parent=11 // pred_region
        %s183 = smul.u32 19, %s22
        %p184 = scmp.lt.s32.totalorder %s183, 18
        %s185 = scalar_select %p184, %s183, 18
        %p186 = scmp.lt.s32.totalorder %s21, 0
        %s187 = scalar_select %p186, %s21, 0
        %s188 = sadd.s32 %s187, %s185
        %s189 = smul.addr %s188, 4
        %s190 = scalar_lea.vmem %s1, %s189
        %s191 = smul.u32 19, %s22
      $region16: #{stem_conv_bn.1} parent=11 // pred_fallthru
        _
      // Predicated region
      $region17: #{stem_conv_bn.1} parent=11 // pred_check
        %p192 = pneg %p111
      $region18: #{stem_conv_bn.1} parent=11 // pred_check_branch
        %194 = sbr.rel (%p192) target = $region20
      $region19: #{stem_conv_bn.1} parent=11 // pred_region
        %p195 = scmp.lt.s32.totalorder %s21, 0
        %s196 = scalar_select %p195, %s21, 0
        %s197 = scalar_lea.vmem %s2, %s196
      $region20: #{stem_conv_bn.1} parent=11 // pred_fallthru
        _
      // Predicated region
      $region21: #{stem_conv_bn.1} parent=11 // pred_check
        %p198 = pneg %p137
      $region22: #{stem_conv_bn.1} parent=11 // pred_check_branch
        %200 = sbr.rel (%p198) target = $region24
      $region23: #{stem_conv_bn.1} parent=11 // pred_region
        %p201 = scmp.lt.s32.totalorder %s21, 0
        %s202 = scalar_select %p201, %s21, 0
        %s203 = scalar_lea.vmem %s3, %s202
      $region24: #{stem_conv_bn.1} parent=11 // pred_fallthru
        _
    $region12: #{stem_conv_bn.1} parent=5 // pred_fallthru
      _
    %p204 = scmp.lt.s32.totalorder %s10, 28
    // Predicated region
    $region25: #{stem_conv_bn.1} parent=5 // pred_check
      %p205 = pneg %p204
    $region26: #{stem_conv_bn.1} parent=5 // pred_check_branch
      %207 = sbr.rel (%p205) target = $region28
    $region27: #{stem_conv_bn.1} parent=5 // pred_region
      // Predicated region
      $region29: #{stem_conv_bn.1} parent=27 // pred_check
        %p208 = pneg %p51
      $region30: #{stem_conv_bn.1} parent=27 // pred_check_branch
        %210 = sbr.rel (%p208) target = $region32
      $region31: #{stem_conv_bn.1} parent=27 // pred_region
        %s211 = smul.u32 56, %s17
        %s212 = smul.u32 2, %s19
        %p213 = scmp.lt.s32.totalorder %s211, 1567
        %s214 = scalar_select %p213, %s211, 1567
        %p215 = scmp.lt.s32.totalorder %s212, 1
        %s216 = scalar_select %p215, %s212, 1
        %s217 = smul.addr %s214, 2
        %s218 = sadd.s32 %s216, %s217
        %s219 = smul.addr %s218, 4
        %s220 = scalar_lea.vmem %s0, %s219
        %s221 = smul.u32 56, %s17
        %s222 = smul.u32 2, %s19
      $region32: #{stem_conv_bn.1} parent=27 // pred_fallthru
        _
    $region28: #{stem_conv_bn.1} parent=5 // pred_fallthru
      _
    %p223 = scmp.le.s32.totalorder 1, %s10
    %p224 = scmp.lt.s32.totalorder %s10, 29
    %p225 = pnand %p223, %p224
    %p226 = pneg %p225
    // Predicated region
    $region33: #{stem_conv_bn.1} parent=5 // pred_check
      _
    $region34: #{stem_conv_bn.1} parent=5 // pred_check_branch
      %228 = sbr.rel (%p225) target = $region36
    $region35: #{stem_conv_bn.1} parent=5 // pred_region
      %s229 = ssub.s32 %s10, 1
      %s230 = smul.u32 56, %s20
      %s231 = smul.u32 2, %s22
      %p232 = scmp.lt.s32.totalorder %s230, 1567
      %s233 = scalar_select %p232, %s230, 1567
      %p234 = scmp.lt.s32.totalorder %s231, 1
      %s235 = scalar_select %p234, %s231, 1
      %s236 = smul.addr %s233, 2
      %s237 = sadd.s32 %s235, %s236
      %s238 = smul.addr %s237, 4
      %s239 = scalar_lea.vmem %s0, %s238
      %p240 = pneg %p57
      %p241 = pneg %p54
      %s242 = smul.u32 19, %s22
      %p243 = scmp.lt.s32.totalorder %s242, 18
      %s244 = scalar_select %p243, %s242, 18
      %p245 = scmp.lt.s32.totalorder %s21, 0
      %s246 = scalar_select %p245, %s21, 0
      %s247 = sadd.s32 %s246, %s244
      %s248 = smul.addr %s247, 4
      %s249 = scalar_lea.vmem %s1, %s248
      %p250 = pneg %p85
      %p251 = pneg %p82
      %p252 = scmp.lt.s32.totalorder %s21, 0
      %s253 = scalar_select %p252, %s21, 0
      %s254 = scalar_lea.vmem %s2, %s253
      %p255 = pneg %p111
      %p256 = pneg %p108
      %p257 = scmp.lt.s32.totalorder %s21, 0
      %s258 = scalar_select %p257, %s21, 0
      %s259 = scalar_lea.vmem %s3, %s258
      %p260 = pneg %p137
      %p261 = pneg %p134
      %p262 = pneg %p165
      %p263 = pneg %p162
      %s264 = smul.u32 56, %s20
      %p265 = scmp.lt.s32.totalorder %s264, 1567
      %s266 = scalar_select %p265, %s264, 1567
      %p267 = scmp.lt.s32.totalorder %s21, 0
      %s268 = scalar_select %p267, %s21, 0
      %s269 = sadd.s32 %s268, %s266
      %s270 = smul.addr %s269, 4
      %s271 = scalar_lea.vmem %s4, %s270
      %s272 = smul.u32 56, %s20
      %s273 = smul.u32 2, %s22
      %p274 = scmp.lt.s32.totalorder %s272, 1567
      %s275 = scalar_select %p274, %s272, 1567
      %p276 = scmp.lt.s32.totalorder %s273, 1
      %s277 = scalar_select %p276, %s273, 1
      %s278 = smul.addr %s275, 2
      %s279 = sadd.s32 %s277, %s278
      %s280 = smul.addr %s279, 4
      %s281 = scalar_lea.vmem %s0, %s280
      %s282 = smul.u32 56, %s20
      %s283 = smul.u32 2, %s22
      %s284 = smul.u32 19, %s22
      %p285 = scmp.lt.s32.totalorder %s284, 18
      %s286 = scalar_select %p285, %s284, 18
      %p287 = scmp.lt.s32.totalorder %s21, 0
      %s288 = scalar_select %p287, %s21, 0
      %s289 = sadd.s32 %s288, %s286
      %s290 = smul.addr %s289, 4
      %s291 = scalar_lea.vmem %s1, %s290
      %s292 = smul.u32 19, %s22
      %p293 = scmp.lt.s32.totalorder %s21, 0
      %s294 = scalar_select %p293, %s21, 0
      %s295 = scalar_lea.vmem %s2, %s294
      %p296 = scmp.lt.s32.totalorder %s21, 0
      %s297 = scalar_select %p296, %s21, 0
      %s298 = scalar_lea.vmem %s3, %s297
      %s299 = smul.u32 56, %s20
      %p300 = scmp.lt.s32.totalorder %s299, 1567
      %s301 = scalar_select %p300, %s299, 1567
      %p302 = scmp.lt.s32.totalorder %s21, 0
      %s303 = scalar_select %p302, %s21, 0
      %s304 = sadd.s32 %s303, %s301
      %s305 = smul.addr %s304, 4
      %s306 = scalar_lea.vmem %s4, %s305
      %s307 = smul.u32 56, %s20
      %p309 = scmp.eq.s32.totalorder %s22, 0
      // Predicated region
      $region37: #{stem_conv_bn.1} parent=35 // pred_check
        %p310 = pneg %p309
      $region38: #{stem_conv_bn.1} parent=35 // pred_check_branch
        %312 = sbr.rel (%p310) target = $region40
      $region39: #{stem_conv_bn.1} parent=35 // pred_region
        %vm313 = vcmask 523264
        %314 = vst.msk [vmem:[#allocation2] sm:$0xff] %vm313, 0.0
        %315 = vst.msk [vmem:[#allocation2 + $0x8] sm:$0xff] %vm313, 0.0
        %316 = vst.msk [vmem:[#allocation2 + $0x10] sm:$0xff] %vm313, 0.0
        %317 = vst.msk [vmem:[#allocation2 + $0x18] sm:$0xff] %vm313, 0.0
        %318 = vst.msk [vmem:[#allocation2 + $0x20] sm:$0xff] %vm313, 0.0
        %319 = vst.msk [vmem:[#allocation2 + $0x28] sm:$0xff] %vm313, 0.0
        %320 = vst.msk [vmem:[#allocation2 + $0x30] sm:$0xff] %vm313, 0.0
        %321 = vst.msk [vmem:[#allocation2 + $0x38] sm:$0xff] %vm313, 0.0
        %322 = vst.msk [vmem:[#allocation2 + $0x40] sm:$0xff] %vm313, 0.0
        %323 = vst.msk [vmem:[#allocation2 + $0x48] sm:$0xff] %vm313, 0.0
        %324 = vst.msk [vmem:[#allocation2 + $0x50] sm:$0xff] %vm313, 0.0
        %325 = vst.msk [vmem:[#allocation2 + $0x58] sm:$0xff] %vm313, 0.0
        %326 = vst.msk [vmem:[#allocation2 + $0x60] sm:$0xff] %vm313, 0.0
        %327 = vst.msk [vmem:[#allocation2 + $0x68] sm:$0xff] %vm313, 0.0
        %328 = vst.msk [vmem:[#allocation2 + $0x70] sm:$0xff] %vm313, 0.0
        %329 = vst.msk [vmem:[#allocation2 + $0x78] sm:$0xff] %vm313, 0.0
        %330 = vst.msk [vmem:[#allocation2 + $0x80] sm:$0xff] %vm313, 0.0
        %331 = vst.msk [vmem:[#allocation2 + $0x88] sm:$0xff] %vm313, 0.0
        %332 = vst.msk [vmem:[#allocation2 + $0x90] sm:$0xff] %vm313, 0.0
        %333 = vst.msk [vmem:[#allocation2 + $0x98] sm:$0xff] %vm313, 0.0
        %334 = vst.msk [vmem:[#allocation2 + $0xa0] sm:$0xff] %vm313, 0.0
        %335 = vst.msk [vmem:[#allocation2 + $0xa8] sm:$0xff] %vm313, 0.0
        %336 = vst.msk [vmem:[#allocation2 + $0xb0] sm:$0xff] %vm313, 0.0
        %337 = vst.msk [vmem:[#allocation2 + $0xb8] sm:$0xff] %vm313, 0.0
        %338 = vst.msk [vmem:[#allocation2 + $0xc0] sm:$0xff] %vm313, 0.0
        %339 = vst.msk [vmem:[#allocation2 + $0xc8] sm:$0xff] %vm313, 0.0
        %340 = vst.msk [vmem:[#allocation2 + $0xd0] sm:$0xff] %vm313, 0.0
        %341 = vst.msk [vmem:[#allocation2 + $0xd8] sm:$0xff] %vm313, 0.0
        %342 = vst.msk [vmem:[#allocation2 + $0xe0] sm:$0xff] %vm313, 0.0
        %343 = vst.msk [vmem:[#allocation2 + $0xe8] sm:$0xff] %vm313, 0.0
        %344 = vst.msk [vmem:[#allocation2 + $0xf0] sm:$0xff] %vm313, 0.0
        %345 = vst.msk [vmem:[#allocation2 + $0xf8] sm:$0xff] %vm313, 0.0
        %346 = vst.msk [vmem:[#allocation2 + $0x100] sm:$0xff] %vm313, 0.0
        %347 = vst.msk [vmem:[#allocation2 + $0x108] sm:$0xff] %vm313, 0.0
        %348 = vst.msk [vmem:[#allocation2 + $0x110] sm:$0xff] %vm313, 0.0
        %349 = vst.msk [vmem:[#allocation2 + $0x118] sm:$0xff] %vm313, 0.0
        %350 = vst.msk [vmem:[#allocation2 + $0x120] sm:$0xff] %vm313, 0.0
        %351 = vst.msk [vmem:[#allocation2 + $0x128] sm:$0xff] %vm313, 0.0
        %352 = vst.msk [vmem:[#allocation2 + $0x130] sm:$0xff] %vm313, 0.0
        %353 = vst.msk [vmem:[#allocation2 + $0x138] sm:$0xff] %vm313, 0.0
        %354 = vst.msk [vmem:[#allocation2 + $0x140] sm:$0xff] %vm313, 0.0
        %355 = vst.msk [vmem:[#allocation2 + $0x148] sm:$0xff] %vm313, 0.0
        %356 = vst.msk [vmem:[#allocation2 + $0x150] sm:$0xff] %vm313, 0.0
        %357 = vst.msk [vmem:[#allocation2 + $0x158] sm:$0xff] %vm313, 0.0
        %358 = vst.msk [vmem:[#allocation2 + $0x160] sm:$0xff] %vm313, 0.0
        %359 = vst.msk [vmem:[#allocation2 + $0x168] sm:$0xff] %vm313, 0.0
        %360 = vst.msk [vmem:[#allocation2 + $0x170] sm:$0xff] %vm313, 0.0
        %361 = vst.msk [vmem:[#allocation2 + $0x178] sm:$0xff] %vm313, 0.0
        %362 = vst.msk [vmem:[#allocation2 + $0x180] sm:$0xff] %vm313, 0.0
        %363 = vst.msk [vmem:[#allocation2 + $0x188] sm:$0xff] %vm313, 0.0
        %364 = vst.msk [vmem:[#allocation2 + $0x190] sm:$0xff] %vm313, 0.0
        %365 = vst.msk [vmem:[#allocation2 + $0x198] sm:$0xff] %vm313, 0.0
        %366 = vst.msk [vmem:[#allocation2 + $0x1a0] sm:$0xff] %vm313, 0.0
        %367 = vst.msk [vmem:[#allocation2 + $0x1a8] sm:$0xff] %vm313, 0.0
        %368 = vst.msk [vmem:[#allocation2 + $0x1b0] sm:$0xff] %vm313, 0.0
        %369 = vst.msk [vmem:[#allocation2 + $0x1b8] sm:$0xff] %vm313, 0.0
      $region40: #{stem_conv_bn.1} parent=35 // pred_fallthru
        _
      %v370 = vld [vmem:[#allocation2] sm:$0xff]
      %v371 = vld [vmem:[#allocation2 + $0x8] sm:$0xff]
      %v372 = vld [vmem:[#allocation2 + $0x10] sm:$0xff]
      %v373 = vld [vmem:[#allocation2 + $0x18] sm:$0xff]
      %v374 = vld [vmem:[#allocation2 + $0x20] sm:$0xff]
      %v375 = vld [vmem:[#allocation2 + $0x28] sm:$0xff]
      %v376 = vld [vmem:[#allocation2 + $0x30] sm:$0xff]
      %v377 = vld [vmem:[#allocation2 + $0x38] sm:$0xff]
      %v378 = vld [vmem:[#allocation2 + $0x40] sm:$0xff]
      %v379 = vld [vmem:[#allocation2 + $0x48] sm:$0xff]
      %v380 = vld [vmem:[#allocation2 + $0x50] sm:$0xff]
      %v381 = vld [vmem:[#allocation2 + $0x58] sm:$0xff]
      %v382 = vld [vmem:[#allocation2 + $0x60] sm:$0xff]
      %v383 = vld [vmem:[#allocation2 + $0x68] sm:$0xff]
      %v384 = vld [vmem:[#allocation2 + $0x70] sm:$0xff]
      %v385 = vld [vmem:[#allocation2 + $0x78] sm:$0xff]
      %v386 = vld [vmem:[#allocation2 + $0x80] sm:$0xff]
      %v387 = vld [vmem:[#allocation2 + $0x88] sm:$0xff]
      %v388 = vld [vmem:[#allocation2 + $0x90] sm:$0xff]
      %v389 = vld [vmem:[#allocation2 + $0x98] sm:$0xff]
      %v390 = vld [vmem:[#allocation2 + $0xa0] sm:$0xff]
      %v391 = vld [vmem:[#allocation2 + $0xa8] sm:$0xff]
      %v392 = vld [vmem:[#allocation2 + $0xb0] sm:$0xff]
      %v393 = vld [vmem:[#allocation2 + $0xb8] sm:$0xff]
      %v394 = vld [vmem:[#allocation2 + $0xc0] sm:$0xff]
      %v395 = vld [vmem:[#allocation2 + $0xc8] sm:$0xff]
      %v396 = vld [vmem:[#allocation2 + $0xd0] sm:$0xff]
      %v397 = vld [vmem:[#allocation2 + $0xd8] sm:$0xff]
      %v398 = vld [vmem:[#allocation2 + $0xe0] sm:$0xff]
      %v399 = vld [vmem:[#allocation2 + $0xe8] sm:$0xff]
      %v400 = vld [vmem:[#allocation2 + $0xf0] sm:$0xff]
      %v401 = vld [vmem:[#allocation2 + $0xf8] sm:$0xff]
      %v402 = vld [vmem:[#allocation2 + $0x100] sm:$0xff]
      %v403 = vld [vmem:[#allocation2 + $0x108] sm:$0xff]
      %v404 = vld [vmem:[#allocation2 + $0x110] sm:$0xff]
      %v405 = vld [vmem:[#allocation2 + $0x118] sm:$0xff]
      %v406 = vld [vmem:[#allocation2 + $0x120] sm:$0xff]
      %v407 = vld [vmem:[#allocation2 + $0x128] sm:$0xff]
      %v408 = vld [vmem:[#allocation2 + $0x130] sm:$0xff]
      %v409 = vld [vmem:[#allocation2 + $0x138] sm:$0xff]
      %v410 = vld [vmem:[#allocation2 + $0x140] sm:$0xff]
      %v411 = vld [vmem:[#allocation2 + $0x148] sm:$0xff]
      %v412 = vld [vmem:[#allocation2 + $0x150] sm:$0xff]
      %v413 = vld [vmem:[#allocation2 + $0x158] sm:$0xff]
      %v414 = vld [vmem:[#allocation2 + $0x160] sm:$0xff]
      %v415 = vld [vmem:[#allocation2 + $0x168] sm:$0xff]
      %v416 = vld [vmem:[#allocation2 + $0x170] sm:$0xff]
      %v417 = vld [vmem:[#allocation2 + $0x178] sm:$0xff]
      %v418 = vld [vmem:[#allocation2 + $0x180] sm:$0xff]
      %v419 = vld [vmem:[#allocation2 + $0x188] sm:$0xff]
      %v420 = vld [vmem:[#allocation2 + $0x190] sm:$0xff]
      %v421 = vld [vmem:[#allocation2 + $0x198] sm:$0xff]
      %v422 = vld [vmem:[#allocation2 + $0x1a0] sm:$0xff]
      %v423 = vld [vmem:[#allocation2 + $0x1a8] sm:$0xff]
      %v424 = vld [vmem:[#allocation2 + $0x1b0] sm:$0xff]
      %v425 = vld [vmem:[#allocation2 + $0x1b8] sm:$0xff]
      %v426 = vld [vmem:[%s281] sm:$0xff]
      %v427 = vld [vmem:[%s281 + $0x8] sm:$0xff]
      %v428 = vld [vmem:[%s281 + $0x10] sm:$0xff]
      %v429 = vld [vmem:[%s281 + $0x18] sm:$0xff]
      %v430 = vld [vmem:[%s281 + $0x20] sm:$0xff]
      %v431 = vld [vmem:[%s281 + $0x28] sm:$0xff]
      %v432 = vld [vmem:[%s281 + $0x30] sm:$0xff]
      %v433 = vld [vmem:[%s281 + $0x38] sm:$0xff]
      %v434 = vld [vmem:[%s281 + $0x40] sm:$0xff]
      %v435 = vld [vmem:[%s281 + $0x48] sm:$0xff]
      %v436 = vld [vmem:[%s281 + $0x50] sm:$0xff]
      %v437 = vld [vmem:[%s281 + $0x58] sm:$0xff]
      %v438 = vld [vmem:[%s281 + $0x60] sm:$0xff]
      %v439 = vld [vmem:[%s281 + $0x68] sm:$0xff]
      %v440 = vld [vmem:[%s281 + $0x70] sm:$0xff]
      %v441 = vld [vmem:[%s281 + $0x78] sm:$0xff]
      %v442 = vld [vmem:[%s281 + $0x80] sm:$0xff]
      %v443 = vld [vmem:[%s281 + $0x88] sm:$0xff]
      %v444 = vld [vmem:[%s281 + $0x90] sm:$0xff]
      %v445 = vld [vmem:[%s281 + $0x98] sm:$0xff]
      %v446 = vld [vmem:[%s281 + $0xa0] sm:$0xff]
      %v447 = vld [vmem:[%s281 + $0xa8] sm:$0xff]
      %v448 = vld [vmem:[%s281 + $0xb0] sm:$0xff]
      %v449 = vld [vmem:[%s281 + $0xb8] sm:$0xff]
      %v450 = vld [vmem:[%s281 + $0xc0] sm:$0xff]
      %v451 = vld [vmem:[%s281 + $0xc8] sm:$0xff]
      %v452 = vld [vmem:[%s281 + $0xd0] sm:$0xff]
      %v453 = vld [vmem:[%s281 + $0xd8] sm:$0xff]
      %v454 = vld [vmem:[%s281 + $0xe0] sm:$0xff]
      %v455 = vld [vmem:[%s281 + $0xe8] sm:$0xff]
      %v456 = vld [vmem:[%s281 + $0xf0] sm:$0xff]
      %v457 = vld [vmem:[%s281 + $0xf8] sm:$0xff]
      %v458 = vld [vmem:[%s281 + $0x100] sm:$0xff]
      %v459 = vld [vmem:[%s281 + $0x108] sm:$0xff]
      %v460 = vld [vmem:[%s281 + $0x110] sm:$0xff]
      %v461 = vld [vmem:[%s281 + $0x118] sm:$0xff]
      %v462 = vld [vmem:[%s281 + $0x120] sm:$0xff]
      %v463 = vld [vmem:[%s281 + $0x128] sm:$0xff]
      %v464 = vld [vmem:[%s281 + $0x130] sm:$0xff]
      %v465 = vld [vmem:[%s281 + $0x138] sm:$0xff]
      %v466 = vld [vmem:[%s281 + $0x140] sm:$0xff]
      %v467 = vld [vmem:[%s281 + $0x148] sm:$0xff]
      %v468 = vld [vmem:[%s281 + $0x150] sm:$0xff]
      %v469 = vld [vmem:[%s281 + $0x158] sm:$0xff]
      %v470 = vld [vmem:[%s281 + $0x160] sm:$0xff]
      %v471 = vld [vmem:[%s281 + $0x168] sm:$0xff]
      %v472 = vld [vmem:[%s281 + $0x170] sm:$0xff]
      %v473 = vld [vmem:[%s281 + $0x178] sm:$0xff]
      %v474 = vld [vmem:[%s281 + $0x180] sm:$0xff]
      %v475 = vld [vmem:[%s281 + $0x188] sm:$0xff]
      %v476 = vld [vmem:[%s281 + $0x190] sm:$0xff]
      %v477 = vld [vmem:[%s281 + $0x198] sm:$0xff]
      %v478 = vld [vmem:[%s281 + $0x1a0] sm:$0xff]
      %v479 = vld [vmem:[%s281 + $0x1a8] sm:$0xff]
      %v480 = vld [vmem:[%s281 + $0x1b0] sm:$0xff]
      %v481 = vld [vmem:[%s281 + $0x1b8] sm:$0xff]
      %v482 = vld [vmem:[%s291] sm:$0xf]
      %v483 = vld [vmem:[%s291 + $0x4] sm:$0xf]
      %v484 = vld [vmem:[%s291 + $0x8] sm:$0xf]
      %v485 = vld [vmem:[%s291 + $0xc] sm:$0xf]
      %v486 = vld [vmem:[%s291 + $0x10] sm:$0xf]
      %v487 = vld [vmem:[%s291 + $0x14] sm:$0xf]
      %v488 = vld [vmem:[%s291 + $0x18] sm:$0xf]
      %v489 = vld [vmem:[%s291 + $0x1c] sm:$0xf]
      %v490 = vld [vmem:[%s291 + $0x20] sm:$0xf]
      %v491 = vld [vmem:[%s291 + $0x24] sm:$0xf]
      %v492 = vld [vmem:[%s291 + $0x28] sm:$0xf]
      %v493 = vld [vmem:[%s291 + $0x2c] sm:$0xf]
      %v494 = vld [vmem:[%s291 + $0x30] sm:$0xf]
      %v495 = vld [vmem:[%s291 + $0x34] sm:$0xf]
      %v496 = vld [vmem:[%s291 + $0x38] sm:$0xf]
      %v497 = vld [vmem:[%s291 + $0x3c] sm:$0xf]
      %v498 = vld [vmem:[%s291 + $0x40] sm:$0xf]
      %v499 = vld [vmem:[%s291 + $0x44] sm:$0xf]
      %v500 = vld [vmem:[%s291 + $0x48] sm:$0x3]
      %v557 = vunpack.c.l.b16 %v426
      %v558 = vunpack.c.h.b16 %v426
      %v559 = vunpack.c.l.b16 %v427
      %v560 = vunpack.c.h.b16 %v427
      %v561 = vunpack.c.l.b16 %v428
      %v562 = vunpack.c.h.b16 %v428
      %v563 = vunpack.c.l.b16 %v429
      %v564 = vunpack.c.h.b16 %v429
      %v565 = vunpack.c.l.b16 %v430
      %v566 = vunpack.c.h.b16 %v430
      %v567 = vunpack.c.l.b16 %v431
      %v568 = vunpack.c.h.b16 %v431
      %v569 = vunpack.c.l.b16 %v432
      %v570 = vunpack.c.h.b16 %v432
      %v571 = vunpack.c.l.b16 %v433
      %v572 = vunpack.c.h.b16 %v433
      %v573 = vunpack.c.l.b16 %v434
      %v574 = vunpack.c.h.b16 %v434
      %v575 = vunpack.c.l.b16 %v435
      %v576 = vunpack.c.h.b16 %v435
      %v577 = vunpack.c.l.b16 %v436
      %v578 = vunpack.c.h.b16 %v436
      %v579 = vunpack.c.l.b16 %v437
      %v580 = vunpack.c.h.b16 %v437
      %v581 = vunpack.c.l.b16 %v438
      %v582 = vunpack.c.h.b16 %v438
      %v583 = vunpack.c.l.b16 %v439
      %v584 = vunpack.c.h.b16 %v439
      %v585 = vunpack.c.l.b16 %v440
      %v586 = vunpack.c.h.b16 %v440
      %v587 = vunpack.c.l.b16 %v441
      %v588 = vunpack.c.h.b16 %v441
      %v589 = vunpack.c.l.b16 %v442
      %v590 = vunpack.c.h.b16 %v442
      %v591 = vunpack.c.l.b16 %v443
      %v592 = vunpack.c.h.b16 %v443
      %v593 = vunpack.c.l.b16 %v444
      %v594 = vunpack.c.h.b16 %v444
      %v595 = vunpack.c.l.b16 %v445
      %v596 = vunpack.c.h.b16 %v445
      %v597 = vunpack.c.l.b16 %v446
      %v598 = vunpack.c.h.b16 %v446
      %v599 = vunpack.c.l.b16 %v447
      %v600 = vunpack.c.h.b16 %v447
      %v601 = vunpack.c.l.b16 %v448
      %v602 = vunpack.c.h.b16 %v448
      %v603 = vunpack.c.l.b16 %v449
      %v604 = vunpack.c.h.b16 %v449
      %v605 = vunpack.c.l.b16 %v450
      %v606 = vunpack.c.h.b16 %v450
      %v607 = vunpack.c.l.b16 %v451
      %v608 = vunpack.c.h.b16 %v451
      %v609 = vunpack.c.l.b16 %v452
      %v610 = vunpack.c.h.b16 %v452
      %v611 = vunpack.c.l.b16 %v453
      %v612 = vunpack.c.h.b16 %v453
      %v613 = vunpack.c.l.b16 %v454
      %v614 = vunpack.c.h.b16 %v454
      %v615 = vunpack.c.l.b16 %v455
      %v616 = vunpack.c.h.b16 %v455
      %v617 = vunpack.c.l.b16 %v456
      %v618 = vunpack.c.h.b16 %v456
      %v619 = vunpack.c.l.b16 %v457
      %v620 = vunpack.c.h.b16 %v457
      %v621 = vunpack.c.l.b16 %v458
      %v622 = vunpack.c.h.b16 %v458
      %v623 = vunpack.c.l.b16 %v459
      %v624 = vunpack.c.h.b16 %v459
      %v625 = vunpack.c.l.b16 %v460
      %v626 = vunpack.c.h.b16 %v460
      %v627 = vunpack.c.l.b16 %v461
      %v628 = vunpack.c.h.b16 %v461
      %v629 = vunpack.c.l.b16 %v462
      %v630 = vunpack.c.h.b16 %v462
      %v631 = vunpack.c.l.b16 %v463
      %v632 = vunpack.c.h.b16 %v463
      %v633 = vunpack.c.l.b16 %v464
      %v634 = vunpack.c.h.b16 %v464
      %v635 = vunpack.c.l.b16 %v465
      %v636 = vunpack.c.h.b16 %v465
      %v637 = vunpack.c.l.b16 %v466
      %v638 = vunpack.c.h.b16 %v466
      %v639 = vunpack.c.l.b16 %v467
      %v640 = vunpack.c.h.b16 %v467
      %v641 = vunpack.c.l.b16 %v468
      %v642 = vunpack.c.h.b16 %v468
      %v643 = vunpack.c.l.b16 %v469
      %v644 = vunpack.c.h.b16 %v469
      %v645 = vunpack.c.l.b16 %v470
      %v646 = vunpack.c.h.b16 %v470
      %v647 = vunpack.c.l.b16 %v471
      %v648 = vunpack.c.h.b16 %v471
      %v649 = vunpack.c.l.b16 %v472
      %v650 = vunpack.c.h.b16 %v472
      %v651 = vunpack.c.l.b16 %v473
      %v652 = vunpack.c.h.b16 %v473
      %v653 = vunpack.c.l.b16 %v474
      %v654 = vunpack.c.h.b16 %v474
      %v655 = vunpack.c.l.b16 %v475
      %v656 = vunpack.c.h.b16 %v475
      %v657 = vunpack.c.l.b16 %v476
      %v658 = vunpack.c.h.b16 %v476
      %v659 = vunpack.c.l.b16 %v477
      %v660 = vunpack.c.h.b16 %v477
      %v661 = vunpack.c.l.b16 %v478
      %v662 = vunpack.c.h.b16 %v478
      %v663 = vunpack.c.l.b16 %v479
      %v664 = vunpack.c.h.b16 %v479
      %v665 = vunpack.c.l.b16 %v480
      %v666 = vunpack.c.h.b16 %v480
      %v667 = vunpack.c.l.b16 %v481
      %v668 = vunpack.c.h.b16 %v481
      %v669 = vpack.c.b16 %v559, %v557
      %v670 = vpack.c.b16 %v560, %v558
      %v671 = vpack.c.b16 %v563, %v561
      %v672 = vpack.c.b16 %v564, %v562
      %v673 = vpack.c.b16 %v567, %v565
      %v674 = vpack.c.b16 %v568, %v566
      %v675 = vpack.c.b16 %v571, %v569
      %v676 = vpack.c.b16 %v572, %v570
      %v677 = vpack.c.b16 %v575, %v573
      %v678 = vpack.c.b16 %v576, %v574
      %v679 = vpack.c.b16 %v579, %v577
      %v680 = vpack.c.b16 %v580, %v578
      %v681 = vpack.c.b16 %v583, %v581
      %v682 = vpack.c.b16 %v584, %v582
      %v683 = vpack.c.b16 %v587, %v585
      %v684 = vpack.c.b16 %v588, %v586
      %v685 = vpack.c.b16 %v591, %v589
      %v686 = vpack.c.b16 %v592, %v590
      %v687 = vpack.c.b16 %v595, %v593
      %v688 = vpack.c.b16 %v596, %v594
      %v689 = vpack.c.b16 %v599, %v597
      %v690 = vpack.c.b16 %v600, %v598
      %v691 = vpack.c.b16 %v603, %v601
      %v692 = vpack.c.b16 %v604, %v602
      %v693 = vpack.c.b16 %v607, %v605
      %v694 = vpack.c.b16 %v608, %v606
      %v695 = vpack.c.b16 %v611, %v609
      %v696 = vpack.c.b16 %v612, %v610
      %v697 = vpack.c.b16 %v615, %v613
      %v698 = vpack.c.b16 %v616, %v614
      %v699 = vpack.c.b16 %v619, %v617
      %v700 = vpack.c.b16 %v620, %v618
      %v701 = vpack.c.b16 %v623, %v621
      %v702 = vpack.c.b16 %v624, %v622
      %v703 = vpack.c.b16 %v627, %v625
      %v704 = vpack.c.b16 %v628, %v626
      %v705 = vpack.c.b16 %v631, %v629
      %v706 = vpack.c.b16 %v632, %v630
      %v707 = vpack.c.b16 %v635, %v633
      %v708 = vpack.c.b16 %v636, %v634
      %v709 = vpack.c.b16 %v639, %v637
      %v710 = vpack.c.b16 %v640, %v638
      %v711 = vpack.c.b16 %v643, %v641
      %v712 = vpack.c.b16 %v644, %v642
      %v713 = vpack.c.b16 %v647, %v645
      %v714 = vpack.c.b16 %v648, %v646
      %v715 = vpack.c.b16 %v651, %v649
      %v716 = vpack.c.b16 %v652, %v650
      %v717 = vpack.c.b16 %v655, %v653
      %v718 = vpack.c.b16 %v656, %v654
      %v719 = vpack.c.b16 %v659, %v657
      %v720 = vpack.c.b16 %v660, %v658
      %v721 = vpack.c.b16 %v663, %v661
      %v722 = vpack.c.b16 %v664, %v662
      %v723 = vpack.c.b16 %v667, %v665
      %v724 = vpack.c.b16 %v668, %v666
      %v772 = vunpack.c.l.b16 %v482
      %v773 = vunpack.c.l.b16 %v483
      %v774 = vunpack.c.l.b16 %v484
      %v775 = vunpack.c.l.b16 %v485
      %v776 = vunpack.c.l.b16 %v486
      %v777 = vunpack.c.l.b16 %v487
      %v778 = vunpack.c.l.b16 %v488
      %v779 = vunpack.c.l.b16 %v489
      %v780 = vunpack.c.l.b16 %v490
      %v781 = vunpack.c.l.b16 %v491
      %v782 = vunpack.c.l.b16 %v492
      %v783 = vunpack.c.l.b16 %v493
      %v784 = vunpack.c.l.b16 %v494
      %v785 = vunpack.c.l.b16 %v495
      %v786 = vunpack.c.l.b16 %v496
      %v787 = vunpack.c.l.b16 %v497
      %v788 = vunpack.c.l.b16 %v498
      %v789 = vunpack.c.l.b16 %v499
      %v790 = vunpack.c.l.b16 %v500
      %v791 = vpack.c.b16 %v773, %v772
      %v792 = vpack.c.b16 %v775, %v774
      %v793 = vpack.c.b16 %v777, %v776
      %v794 = vpack.c.b16 %v779, %v778
      %v795 = vpack.c.b16 %v781, %v780
      %v796 = vpack.c.b16 %v783, %v782
      %v797 = vpack.c.b16 %v785, %v784
      %v798 = vpack.c.b16 %v787, %v786
      %v799 = vpack.c.b16 %v789, %v788
      %v800 = vpack.c.b16 %v790, %v790
      %vm810 = vcmask 154624
      %v812 = vsel %vm810, %v670, 0
      %v815 = vsel %vm810, %v672, 0
      %v818 = vsel %vm810, %v674, 0
      %v821 = vsel %vm810, %v676, 0
      %v824 = vsel %vm810, %v678, 0
      %v827 = vsel %vm810, %v680, 0
      %v830 = vsel %vm810, %v682, 0
      %v833 = vsel %vm810, %v684, 0
      %v836 = vsel %vm810, %v686, 0
      %v839 = vsel %vm810, %v688, 0
      %v842 = vsel %vm810, %v690, 0
      %v845 = vsel %vm810, %v692, 0
      %v848 = vsel %vm810, %v694, 0
      %v851 = vsel %vm810, %v696, 0
      %v854 = vsel %vm810, %v698, 0
      %v857 = vsel %vm810, %v700, 0
      %v860 = vsel %vm810, %v702, 0
      %v863 = vsel %vm810, %v704, 0
      %v866 = vsel %vm810, %v706, 0
      %v869 = vsel %vm810, %v708, 0
      %v872 = vsel %vm810, %v710, 0
      %v875 = vsel %vm810, %v712, 0
      %v878 = vsel %vm810, %v714, 0
      %v881 = vsel %vm810, %v716, 0
      %v884 = vsel %vm810, %v718, 0
      %v887 = vsel %vm810, %v720, 0
      %v890 = vsel %vm810, %v722, 0
      %v893 = vsel %vm810, %v724, 0
      %vm895 = vcmask 1040384
      %vm896 = vcmask 1041408
      %v897 = vsel %vm895, 4294967295, 65535
      %v898 = vsel %vm896, %v897, 0
      %v900 = vand.u32 %v800, %v898
      %902 = vmatpush.bf16.msra.mxu0 %v798
      %903 = vmatpush.bf16.msra.mxu0 %v797
      %904 = vmatpush.bf16.msra.mxu0 %v796
      %905 = vmatpush.bf16.msra.mxu0 %v795
      %906 = vmatpush.bf16.msra.mxu0 %v794
      %907 = vmatpush.bf16.msra.mxu0 %v793
      %908 = vmatpush.bf16.msra.mxu0 %v792
      %909 = vmatpush.bf16.msra.mxu0 %v791
      %910 = vmatmul.bf16.gmra.mxu0 %v669
      %v911 = vpop.f32.mrf.mxu0
      %v912 = vadd.f32 0.0, %v911
      %v913 = vpop.f32.mrf.mxu0
      %v914 = vadd.f32 0.0, %v913
      %915 = vmatmul.bf16.gmra.mxu0 %v671
      %v916 = vpop.f32.mrf.mxu0
      %v917 = vadd.f32 0.0, %v916
      %v918 = vpop.f32.mrf.mxu0
      %v919 = vadd.f32 0.0, %v918
      %920 = vmatmul.bf16.gmra.mxu0 %v673
      %v921 = vpop.f32.mrf.mxu0
      %v922 = vadd.f32 0.0, %v921
      %v923 = vpop.f32.mrf.mxu0
      %v924 = vadd.f32 0.0, %v923
      %925 = vmatmul.bf16.gmra.mxu0 %v675
      %v926 = vpop.f32.mrf.mxu0
      %v927 = vadd.f32 0.0, %v926
      %v928 = vpop.f32.mrf.mxu0
      %v929 = vadd.f32 0.0, %v928
      %930 = vmatmul.bf16.gmra.mxu0 %v677
      %v931 = vpop.f32.mrf.mxu0
      %v932 = vadd.f32 0.0, %v931
      %v933 = vpop.f32.mrf.mxu0
      %v934 = vadd.f32 0.0, %v933
      %935 = vmatmul.bf16.gmra.mxu0 %v679
      %v936 = vpop.f32.mrf.mxu0
      %v937 = vadd.f32 0.0, %v936
      %v938 = vpop.f32.mrf.mxu0
      %v939 = vadd.f32 0.0, %v938
      %940 = vmatmul.bf16.gmra.mxu0 %v681
      %v941 = vpop.f32.mrf.mxu0
      %v942 = vadd.f32 0.0, %v941
      %v943 = vpop.f32.mrf.mxu0
      %v944 = vadd.f32 0.0, %v943
      %945 = vmatmul.bf16.gmra.mxu0 %v683
      %v946 = vpop.f32.mrf.mxu0
      %v947 = vadd.f32 0.0, %v946
      %v948 = vpop.f32.mrf.mxu0
      %v949 = vadd.f32 0.0, %v948
      %950 = vmatmul.bf16.gmra.mxu0 %v685
      %v951 = vpop.f32.mrf.mxu0
      %v952 = vadd.f32 0.0, %v951
      %v953 = vpop.f32.mrf.mxu0
      %v954 = vadd.f32 0.0, %v953
      %955 = vmatmul.bf16.gmra.mxu0 %v687
      %v956 = vpop.f32.mrf.mxu0
      %v957 = vadd.f32 0.0, %v956
      %v958 = vpop.f32.mrf.mxu0
      %v959 = vadd.f32 0.0, %v958
      %960 = vmatmul.bf16.gmra.mxu0 %v689
      %v961 = vpop.f32.mrf.mxu0
      %v962 = vadd.f32 0.0, %v961
      %v963 = vpop.f32.mrf.mxu0
      %v964 = vadd.f32 0.0, %v963
      %965 = vmatmul.bf16.gmra.mxu0 %v691
      %v966 = vpop.f32.mrf.mxu0
      %v967 = vadd.f32 0.0, %v966
      %v968 = vpop.f32.mrf.mxu0
      %v969 = vadd.f32 0.0, %v968
      %970 = vmatmul.bf16.gmra.mxu0 %v693
      %v971 = vpop.f32.mrf.mxu0
      %v972 = vadd.f32 0.0, %v971
      %v973 = vpop.f32.mrf.mxu0
      %v974 = vadd.f32 0.0, %v973
      %975 = vmatmul.bf16.gmra.mxu0 %v695
      %v976 = vpop.f32.mrf.mxu0
      %v977 = vadd.f32 0.0, %v976
      %v978 = vpop.f32.mrf.mxu0
      %v979 = vadd.f32 0.0, %v978
      %980 = vmatmul.bf16.gmra.mxu0 %v697
      %v981 = vpop.f32.mrf.mxu0
      %v982 = vadd.f32 0.0, %v981
      %v983 = vpop.f32.mrf.mxu0
      %v984 = vadd.f32 0.0, %v983
      %985 = vmatmul.bf16.gmra.mxu0 %v699
      %v986 = vpop.f32.mrf.mxu0
      %v987 = vadd.f32 0.0, %v986
      %v988 = vpop.f32.mrf.mxu0
      %v989 = vadd.f32 0.0, %v988
      %990 = vmatmul.bf16.gmra.mxu0 %v701
      %v991 = vpop.f32.mrf.mxu0
      %v992 = vadd.f32 0.0, %v991
      %v993 = vpop.f32.mrf.mxu0
      %v994 = vadd.f32 0.0, %v993
      %995 = vmatmul.bf16.gmra.mxu0 %v703
      %v996 = vpop.f32.mrf.mxu0
      %v997 = vadd.f32 0.0, %v996
      %v998 = vpop.f32.mrf.mxu0
      %v999 = vadd.f32 0.0, %v998
      %1000 = vmatmul.bf16.gmra.mxu0 %v705
      %v1001 = vpop.f32.mrf.mxu0
      %v1002 = vadd.f32 0.0, %v1001
      %v1003 = vpop.f32.mrf.mxu0
      %v1004 = vadd.f32 0.0, %v1003
      %1005 = vmatmul.bf16.gmra.mxu0 %v707
      %v1006 = vpop.f32.mrf.mxu0
      %v1007 = vadd.f32 0.0, %v1006
      %v1008 = vpop.f32.mrf.mxu0
      %v1009 = vadd.f32 0.0, %v1008
      %1010 = vmatmul.bf16.gmra.mxu0 %v709
      %v1011 = vpop.f32.mrf.mxu0
      %v1012 = vadd.f32 0.0, %v1011
      %v1013 = vpop.f32.mrf.mxu0
      %v1014 = vadd.f32 0.0, %v1013
      %1015 = vmatmul.bf16.gmra.mxu0 %v711
      %v1016 = vpop.f32.mrf.mxu0
      %v1017 = vadd.f32 0.0, %v1016
      %v1018 = vpop.f32.mrf.mxu0
      %v1019 = vadd.f32 0.0, %v1018
      %1020 = vmatmul.bf16.gmra.mxu0 %v713
      %v1021 = vpop.f32.mrf.mxu0
      %v1022 = vadd.f32 0.0, %v1021
      %v1023 = vpop.f32.mrf.mxu0
      %v1024 = vadd.f32 0.0, %v1023
      %1025 = vmatmul.bf16.gmra.mxu0 %v715
      %v1026 = vpop.f32.mrf.mxu0
      %v1027 = vadd.f32 0.0, %v1026
      %v1028 = vpop.f32.mrf.mxu0
      %v1029 = vadd.f32 0.0, %v1028
      %1030 = vmatmul.bf16.gmra.mxu0 %v717
      %v1031 = vpop.f32.mrf.mxu0
      %v1032 = vadd.f32 0.0, %v1031
      %v1033 = vpop.f32.mrf.mxu0
      %v1034 = vadd.f32 0.0, %v1033
      %1035 = vmatmul.bf16.gmra.mxu0 %v719
      %v1036 = vpop.f32.mrf.mxu0
      %v1037 = vadd.f32 0.0, %v1036
      %v1038 = vpop.f32.mrf.mxu0
      %v1039 = vadd.f32 0.0, %v1038
      %1040 = vmatmul.bf16.gmra.mxu0 %v721
      %v1041 = vpop.f32.mrf.mxu0
      %v1042 = vadd.f32 0.0, %v1041
      %v1043 = vpop.f32.mrf.mxu0
      %v1044 = vadd.f32 0.0, %v1043
      %1045 = vmatmul.bf16.gmra.mxu0 %v723
      %v1046 = vpop.f32.mrf.mxu0
      %v1047 = vadd.f32 0.0, %v1046
      %v1048 = vpop.f32.mrf.mxu0
      %v1049 = vadd.f32 0.0, %v1048
      %1050 = vdwg.mxu0
      %1051 = vmatpush.bf16.msra.mxu0 0
      %1052 = vmatpush.bf16.msra.mxu0 0
      %1053 = vmatpush.bf16.msra.mxu0 0
      %1054 = vmatpush.bf16.msra.mxu0 0
      %1055 = vmatpush.bf16.msra.mxu0 0
      %1056 = vmatpush.bf16.msra.mxu0 0
      %1057 = vmatpush.bf16.msra.mxu0 %v900
      %1058 = vmatpush.bf16.msra.mxu0 %v799
      %1059 = vmatmul.bf16.gmra.mxu0 %v812
      %v1060 = vpop.f32.mrf.mxu0
      %v1061 = vadd.f32 %v912, %v1060
      %v1062 = vpop.f32.mrf.mxu0
      %v1063 = vadd.f32 %v914, %v1062
      %1064 = vmatmul.bf16.gmra.mxu0 %v815
      %v1065 = vpop.f32.mrf.mxu0
      %v1066 = vadd.f32 %v917, %v1065
      %v1067 = vpop.f32.mrf.mxu0
      %v1068 = vadd.f32 %v919, %v1067
      %1069 = vmatmul.bf16.gmra.mxu0 %v818
      %v1070 = vpop.f32.mrf.mxu0
      %v1071 = vadd.f32 %v922, %v1070
      %v1072 = vpop.f32.mrf.mxu0
      %v1073 = vadd.f32 %v924, %v1072
      %1074 = vmatmul.bf16.gmra.mxu0 %v821
      %v1075 = vpop.f32.mrf.mxu0
      %v1076 = vadd.f32 %v927, %v1075
      %v1077 = vpop.f32.mrf.mxu0
      %v1078 = vadd.f32 %v929, %v1077
      %1079 = vmatmul.bf16.gmra.mxu0 %v824
      %v1080 = vpop.f32.mrf.mxu0
      %v1081 = vadd.f32 %v932, %v1080
      %v1082 = vpop.f32.mrf.mxu0
      %v1083 = vadd.f32 %v934, %v1082
      %1084 = vmatmul.bf16.gmra.mxu0 %v827
      %v1085 = vpop.f32.mrf.mxu0
      %v1086 = vadd.f32 %v937, %v1085
      %v1087 = vpop.f32.mrf.mxu0
      %v1088 = vadd.f32 %v939, %v1087
      %1089 = vmatmul.bf16.gmra.mxu0 %v830
      %v1090 = vpop.f32.mrf.mxu0
      %v1091 = vadd.f32 %v942, %v1090
      %v1092 = vpop.f32.mrf.mxu0
      %v1093 = vadd.f32 %v944, %v1092
      %1094 = vmatmul.bf16.gmra.mxu0 %v833
      %v1095 = vpop.f32.mrf.mxu0
      %v1096 = vadd.f32 %v947, %v1095
      %v1097 = vpop.f32.mrf.mxu0
      %v1098 = vadd.f32 %v949, %v1097
      %1099 = vmatmul.bf16.gmra.mxu0 %v836
      %v1100 = vpop.f32.mrf.mxu0
      %v1101 = vadd.f32 %v952, %v1100
      %v1102 = vpop.f32.mrf.mxu0
      %v1103 = vadd.f32 %v954, %v1102
      %1104 = vmatmul.bf16.gmra.mxu0 %v839
      %v1105 = vpop.f32.mrf.mxu0
      %v1106 = vadd.f32 %v957, %v1105
      %v1107 = vpop.f32.mrf.mxu0
      %v1108 = vadd.f32 %v959, %v1107
      %1109 = vmatmul.bf16.gmra.mxu0 %v842
      %v1110 = vpop.f32.mrf.mxu0
      %v1111 = vadd.f32 %v962, %v1110
      %v1112 = vpop.f32.mrf.mxu0
      %v1113 = vadd.f32 %v964, %v1112
      %1114 = vmatmul.bf16.gmra.mxu0 %v845
      %v1115 = vpop.f32.mrf.mxu0
      %v1116 = vadd.f32 %v967, %v1115
      %v1117 = vpop.f32.mrf.mxu0
      %v1118 = vadd.f32 %v969, %v1117
      %1119 = vmatmul.bf16.gmra.mxu0 %v848
      %v1120 = vpop.f32.mrf.mxu0
      %v1121 = vadd.f32 %v972, %v1120
      %v1122 = vpop.f32.mrf.mxu0
      %v1123 = vadd.f32 %v974, %v1122
      %1124 = vmatmul.bf16.gmra.mxu0 %v851
      %v1125 = vpop.f32.mrf.mxu0
      %v1126 = vadd.f32 %v977, %v1125
      %v1127 = vpop.f32.mrf.mxu0
      %v1128 = vadd.f32 %v979, %v1127
      %1129 = vmatmul.bf16.gmra.mxu0 %v854
      %v1130 = vpop.f32.mrf.mxu0
      %v1131 = vadd.f32 %v982, %v1130
      %v1132 = vpop.f32.mrf.mxu0
      %v1133 = vadd.f32 %v984, %v1132
      %1134 = vmatmul.bf16.gmra.mxu0 %v857
      %v1135 = vpop.f32.mrf.mxu0
      %v1136 = vadd.f32 %v987, %v1135
      %v1137 = vpop.f32.mrf.mxu0
      %v1138 = vadd.f32 %v989, %v1137
      %1139 = vmatmul.bf16.gmra.mxu0 %v860
      %v1140 = vpop.f32.mrf.mxu0
      %v1141 = vadd.f32 %v992, %v1140
      %v1142 = vpop.f32.mrf.mxu0
      %v1143 = vadd.f32 %v994, %v1142
      %1144 = vmatmul.bf16.gmra.mxu0 %v863
      %v1145 = vpop.f32.mrf.mxu0
      %v1146 = vadd.f32 %v997, %v1145
      %v1147 = vpop.f32.mrf.mxu0
      %v1148 = vadd.f32 %v999, %v1147
      %1149 = vmatmul.bf16.gmra.mxu0 %v866
      %v1150 = vpop.f32.mrf.mxu0
      %v1151 = vadd.f32 %v1002, %v1150
      %v1152 = vpop.f32.mrf.mxu0
      %v1153 = vadd.f32 %v1004, %v1152
      %1154 = vmatmul.bf16.gmra.mxu0 %v869
      %v1155 = vpop.f32.mrf.mxu0
      %v1156 = vadd.f32 %v1007, %v1155
      %v1157 = vpop.f32.mrf.mxu0
      %v1158 = vadd.f32 %v1009, %v1157
      %1159 = vmatmul.bf16.gmra.mxu0 %v872
      %v1160 = vpop.f32.mrf.mxu0
      %v1161 = vadd.f32 %v1012, %v1160
      %v1162 = vpop.f32.mrf.mxu0
      %v1163 = vadd.f32 %v1014, %v1162
      %1164 = vmatmul.bf16.gmra.mxu0 %v875
      %v1165 = vpop.f32.mrf.mxu0
      %v1166 = vadd.f32 %v1017, %v1165
      %v1167 = vpop.f32.mrf.mxu0
      %v1168 = vadd.f32 %v1019, %v1167
      %1169 = vmatmul.bf16.gmra.mxu0 %v878
      %v1170 = vpop.f32.mrf.mxu0
      %v1171 = vadd.f32 %v1022, %v1170
      %v1172 = vpop.f32.mrf.mxu0
      %v1173 = vadd.f32 %v1024, %v1172
      %1174 = vmatmul.bf16.gmra.mxu0 %v881
      %v1175 = vpop.f32.mrf.mxu0
      %v1176 = vadd.f32 %v1027, %v1175
      %v1177 = vpop.f32.mrf.mxu0
      %v1178 = vadd.f32 %v1029, %v1177
      %1179 = vmatmul.bf16.gmra.mxu0 %v884
      %v1180 = vpop.f32.mrf.mxu0
      %v1181 = vadd.f32 %v1032, %v1180
      %v1182 = vpop.f32.mrf.mxu0
      %v1183 = vadd.f32 %v1034, %v1182
      %1184 = vmatmul.bf16.gmra.mxu0 %v887
      %v1185 = vpop.f32.mrf.mxu0
      %v1186 = vadd.f32 %v1037, %v1185
      %v1187 = vpop.f32.mrf.mxu0
      %v1188 = vadd.f32 %v1039, %v1187
      %1189 = vmatmul.bf16.gmra.mxu0 %v890
      %v1190 = vpop.f32.mrf.mxu0
      %v1191 = vadd.f32 %v1042, %v1190
      %v1192 = vpop.f32.mrf.mxu0
      %v1193 = vadd.f32 %v1044, %v1192
      %1194 = vmatmul.bf16.gmra.mxu0 %v893
      %v1195 = vpop.f32.mrf.mxu0
      %v1196 = vadd.f32 %v1047, %v1195
      %v1197 = vpop.f32.mrf.mxu0
      %v1198 = vadd.f32 %v1049, %v1197
      %1199 = vdwg.mxu0
      %v1200 = vadd.f32 %v370, %v1061
      %v1201 = vadd.f32 %v371, %v1063
      %v1202 = vadd.f32 %v372, %v1066
      %v1203 = vadd.f32 %v373, %v1068
      %v1204 = vadd.f32 %v374, %v1071
      %v1205 = vadd.f32 %v375, %v1073
      %v1206 = vadd.f32 %v376, %v1076
      %v1207 = vadd.f32 %v377, %v1078
      %v1208 = vadd.f32 %v378, %v1081
      %v1209 = vadd.f32 %v379, %v1083
      %v1210 = vadd.f32 %v380, %v1086
      %v1211 = vadd.f32 %v381, %v1088
      %v1212 = vadd.f32 %v382, %v1091
      %v1213 = vadd.f32 %v383, %v1093
      %v1214 = vadd.f32 %v384, %v1096
      %v1215 = vadd.f32 %v385, %v1098
      %v1216 = vadd.f32 %v386, %v1101
      %v1217 = vadd.f32 %v387, %v1103
      %v1218 = vadd.f32 %v388, %v1106
      %v1219 = vadd.f32 %v389, %v1108
      %v1220 = vadd.f32 %v390, %v1111
      %v1221 = vadd.f32 %v391, %v1113
      %v1222 = vadd.f32 %v392, %v1116
      %v1223 = vadd.f32 %v393, %v1118
      %v1224 = vadd.f32 %v394, %v1121
      %v1225 = vadd.f32 %v395, %v1123
      %v1226 = vadd.f32 %v396, %v1126
      %v1227 = vadd.f32 %v397, %v1128
      %v1228 = vadd.f32 %v398, %v1131
      %v1229 = vadd.f32 %v399, %v1133
      %v1230 = vadd.f32 %v400, %v1136
      %v1231 = vadd.f32 %v401, %v1138
      %v1232 = vadd.f32 %v402, %v1141
      %v1233 = vadd.f32 %v403, %v1143
      %v1234 = vadd.f32 %v404, %v1146
      %v1235 = vadd.f32 %v405, %v1148
      %v1236 = vadd.f32 %v406, %v1151
      %v1237 = vadd.f32 %v407, %v1153
      %v1238 = vadd.f32 %v408, %v1156
      %v1239 = vadd.f32 %v409, %v1158
      %v1240 = vadd.f32 %v410, %v1161
      %v1241 = vadd.f32 %v411, %v1163
      %v1242 = vadd.f32 %v412, %v1166
      %v1243 = vadd.f32 %v413, %v1168
      %v1244 = vadd.f32 %v414, %v1171
      %v1245 = vadd.f32 %v415, %v1173
      %v1246 = vadd.f32 %v416, %v1176
      %v1247 = vadd.f32 %v417, %v1178
      %v1248 = vadd.f32 %v418, %v1181
      %v1249 = vadd.f32 %v419, %v1183
      %v1250 = vadd.f32 %v420, %v1186
      %v1251 = vadd.f32 %v421, %v1188
      %v1252 = vadd.f32 %v422, %v1191
      %v1253 = vadd.f32 %v423, %v1193
      %v1254 = vadd.f32 %v424, %v1196
      %v1255 = vadd.f32 %v425, %v1198
      %vm1256 = vcmask 523264
      %1257 = vst.msk [vmem:[#allocation2] sm:$0xff] %vm1256, %v1200
      %1258 = vst.msk [vmem:[#allocation2 + $0x8] sm:$0xff] %vm1256, %v1201
      %1259 = vst.msk [vmem:[#allocation2 + $0x10] sm:$0xff] %vm1256, %v1202
      %1260 = vst.msk [vmem:[#allocation2 + $0x18] sm:$0xff] %vm1256, %v1203
      %1261 = vst.msk [vmem:[#allocation2 + $0x20] sm:$0xff] %vm1256, %v1204
      %1262 = vst.msk [vmem:[#allocation2 + $0x28] sm:$0xff] %vm1256, %v1205
      %1263 = vst.msk [vmem:[#allocation2 + $0x30] sm:$0xff] %vm1256, %v1206
      %1264 = vst.msk [vmem:[#allocation2 + $0x38] sm:$0xff] %vm1256, %v1207
      %1265 = vst.msk [vmem:[#allocation2 + $0x40] sm:$0xff] %vm1256, %v1208
      %1266 = vst.msk [vmem:[#allocation2 + $0x48] sm:$0xff] %vm1256, %v1209
      %1267 = vst.msk [vmem:[#allocation2 + $0x50] sm:$0xff] %vm1256, %v1210
      %1268 = vst.msk [vmem:[#allocation2 + $0x58] sm:$0xff] %vm1256, %v1211
      %1269 = vst.msk [vmem:[#allocation2 + $0x60] sm:$0xff] %vm1256, %v1212
      %1270 = vst.msk [vmem:[#allocation2 + $0x68] sm:$0xff] %vm1256, %v1213
      %1271 = vst.msk [vmem:[#allocation2 + $0x70] sm:$0xff] %vm1256, %v1214
      %1272 = vst.msk [vmem:[#allocation2 + $0x78] sm:$0xff] %vm1256, %v1215
      %1273 = vst.msk [vmem:[#allocation2 + $0x80] sm:$0xff] %vm1256, %v1216
      %1274 = vst.msk [vmem:[#allocation2 + $0x88] sm:$0xff] %vm1256, %v1217
      %1275 = vst.msk [vmem:[#allocation2 + $0x90] sm:$0xff] %vm1256, %v1218
      %1276 = vst.msk [vmem:[#allocation2 + $0x98] sm:$0xff] %vm1256, %v1219
      %1277 = vst.msk [vmem:[#allocation2 + $0xa0] sm:$0xff] %vm1256, %v1220
      %1278 = vst.msk [vmem:[#allocation2 + $0xa8] sm:$0xff] %vm1256, %v1221
      %1279 = vst.msk [vmem:[#allocation2 + $0xb0] sm:$0xff] %vm1256, %v1222
      %1280 = vst.msk [vmem:[#allocation2 + $0xb8] sm:$0xff] %vm1256, %v1223
      %1281 = vst.msk [vmem:[#allocation2 + $0xc0] sm:$0xff] %vm1256, %v1224
      %1282 = vst.msk [vmem:[#allocation2 + $0xc8] sm:$0xff] %vm1256, %v1225
      %1283 = vst.msk [vmem:[#allocation2 + $0xd0] sm:$0xff] %vm1256, %v1226
      %1284 = vst.msk [vmem:[#allocation2 + $0xd8] sm:$0xff] %vm1256, %v1227
      %1285 = vst.msk [vmem:[#allocation2 + $0xe0] sm:$0xff] %vm1256, %v1228
      %1286 = vst.msk [vmem:[#allocation2 + $0xe8] sm:$0xff] %vm1256, %v1229
      %1287 = vst.msk [vmem:[#allocation2 + $0xf0] sm:$0xff] %vm1256, %v1230
      %1288 = vst.msk [vmem:[#allocation2 + $0xf8] sm:$0xff] %vm1256, %v1231
      %1289 = vst.msk [vmem:[#allocation2 + $0x100] sm:$0xff] %vm1256, %v1232
      %1290 = vst.msk [vmem:[#allocation2 + $0x108] sm:$0xff] %vm1256, %v1233
      %1291 = vst.msk [vmem:[#allocation2 + $0x110] sm:$0xff] %vm1256, %v1234
      %1292 = vst.msk [vmem:[#allocation2 + $0x118] sm:$0xff] %vm1256, %v1235
      %1293 = vst.msk [vmem:[#allocation2 + $0x120] sm:$0xff] %vm1256, %v1236
      %1294 = vst.msk [vmem:[#allocation2 + $0x128] sm:$0xff] %vm1256, %v1237
      %1295 = vst.msk [vmem:[#allocation2 + $0x130] sm:$0xff] %vm1256, %v1238
      %1296 = vst.msk [vmem:[#allocation2 + $0x138] sm:$0xff] %vm1256, %v1239
      %1297 = vst.msk [vmem:[#allocation2 + $0x140] sm:$0xff] %vm1256, %v1240
      %1298 = vst.msk [vmem:[#allocation2 + $0x148] sm:$0xff] %vm1256, %v1241
      %1299 = vst.msk [vmem:[#allocation2 + $0x150] sm:$0xff] %vm1256, %v1242
      %1300 = vst.msk [vmem:[#allocation2 + $0x158] sm:$0xff] %vm1256, %v1243
      %1301 = vst.msk [vmem:[#allocation2 + $0x160] sm:$0xff] %vm1256, %v1244
      %1302 = vst.msk [vmem:[#allocation2 + $0x168] sm:$0xff] %vm1256, %v1245
      %1303 = vst.msk [vmem:[#allocation2 + $0x170] sm:$0xff] %vm1256, %v1246
      %1304 = vst.msk [vmem:[#allocation2 + $0x178] sm:$0xff] %vm1256, %v1247
      %1305 = vst.msk [vmem:[#allocation2 + $0x180] sm:$0xff] %vm1256, %v1248
      %1306 = vst.msk [vmem:[#allocation2 + $0x188] sm:$0xff] %vm1256, %v1249
      %1307 = vst.msk [vmem:[#allocation2 + $0x190] sm:$0xff] %vm1256, %v1250
      %1308 = vst.msk [vmem:[#allocation2 + $0x198] sm:$0xff] %vm1256, %v1251
      %1309 = vst.msk [vmem:[#allocation2 + $0x1a0] sm:$0xff] %vm1256, %v1252
      %1310 = vst.msk [vmem:[#allocation2 + $0x1a8] sm:$0xff] %vm1256, %v1253
      %1311 = vst.msk [vmem:[#allocation2 + $0x1b0] sm:$0xff] %vm1256, %v1254
      %1312 = vst.msk [vmem:[#allocation2 + $0x1b8] sm:$0xff] %vm1256, %v1255
      // Predicated region
      $region41: #{stem_conv_bn.1} parent=35 // pred_check
        %p1313 = pneg %p309
      $region42: #{stem_conv_bn.1} parent=35 // pred_check_branch
        %1315 = sbr.rel (%p1313) target = $region44
      $region43: #{stem_conv_bn.1} parent=35 // pred_region
        %v1316 = vld [vmem:[#allocation2] sm:$0xff]
        %v1317 = vld [vmem:[#allocation2 + $0x8] sm:$0xff]
        %v1318 = vld [vmem:[#allocation2 + $0x10] sm:$0xff]
        %v1319 = vld [vmem:[#allocation2 + $0x18] sm:$0xff]
        %v1320 = vld [vmem:[#allocation2 + $0x20] sm:$0xff]
        %v1321 = vld [vmem:[#allocation2 + $0x28] sm:$0xff]
        %v1322 = vld [vmem:[#allocation2 + $0x30] sm:$0xff]
        %v1323 = vld [vmem:[#allocation2 + $0x38] sm:$0xff]
        %v1324 = vld [vmem:[#allocation2 + $0x40] sm:$0xff]
        %v1325 = vld [vmem:[#allocation2 + $0x48] sm:$0xff]
        %v1326 = vld [vmem:[#allocation2 + $0x50] sm:$0xff]
        %v1327 = vld [vmem:[#allocation2 + $0x58] sm:$0xff]
        %v1328 = vld [vmem:[#allocation2 + $0x60] sm:$0xff]
        %v1329 = vld [vmem:[#allocation2 + $0x68] sm:$0xff]
        %v1330 = vld [vmem:[#allocation2 + $0x70] sm:$0xff]
        %v1331 = vld [vmem:[#allocation2 + $0x78] sm:$0xff]
        %v1332 = vld [vmem:[#allocation2 + $0x80] sm:$0xff]
        %v1333 = vld [vmem:[#allocation2 + $0x88] sm:$0xff]
        %v1334 = vld [vmem:[#allocation2 + $0x90] sm:$0xff]
        %v1335 = vld [vmem:[#allocation2 + $0x98] sm:$0xff]
        %v1336 = vld [vmem:[#allocation2 + $0xa0] sm:$0xff]
        %v1337 = vld [vmem:[#allocation2 + $0xa8] sm:$0xff]
        %v1338 = vld [vmem:[#allocation2 + $0xb0] sm:$0xff]
        %v1339 = vld [vmem:[#allocation2 + $0xb8] sm:$0xff]
        %v1340 = vld [vmem:[#allocation2 + $0xc0] sm:$0xff]
        %v1341 = vld [vmem:[#allocation2 + $0xc8] sm:$0xff]
        %v1342 = vld [vmem:[#allocation2 + $0xd0] sm:$0xff]
        %v1343 = vld [vmem:[#allocation2 + $0xd8] sm:$0xff]
        %v1344 = vld [vmem:[#allocation2 + $0xe0] sm:$0xff]
        %v1345 = vld [vmem:[#allocation2 + $0xe8] sm:$0xff]
        %v1346 = vld [vmem:[#allocation2 + $0xf0] sm:$0xff]
        %v1347 = vld [vmem:[#allocation2 + $0xf8] sm:$0xff]
        %v1348 = vld [vmem:[#allocation2 + $0x100] sm:$0xff]
        %v1349 = vld [vmem:[#allocation2 + $0x108] sm:$0xff]
        %v1350 = vld [vmem:[#allocation2 + $0x110] sm:$0xff]
        %v1351 = vld [vmem:[#allocation2 + $0x118] sm:$0xff]
        %v1352 = vld [vmem:[#allocation2 + $0x120] sm:$0xff]
        %v1353 = vld [vmem:[#allocation2 + $0x128] sm:$0xff]
        %v1354 = vld [vmem:[#allocation2 + $0x130] sm:$0xff]
        %v1355 = vld [vmem:[#allocation2 + $0x138] sm:$0xff]
        %v1356 = vld [vmem:[#allocation2 + $0x140] sm:$0xff]
        %v1357 = vld [vmem:[#allocation2 + $0x148] sm:$0xff]
        %v1358 = vld [vmem:[#allocation2 + $0x150] sm:$0xff]
        %v1359 = vld [vmem:[#allocation2 + $0x158] sm:$0xff]
        %v1360 = vld [vmem:[#allocation2 + $0x160] sm:$0xff]
        %v1361 = vld [vmem:[#allocation2 + $0x168] sm:$0xff]
        %v1362 = vld [vmem:[#allocation2 + $0x170] sm:$0xff]
        %v1363 = vld [vmem:[#allocation2 + $0x178] sm:$0xff]
        %v1364 = vld [vmem:[#allocation2 + $0x180] sm:$0xff]
        %v1365 = vld [vmem:[#allocation2 + $0x188] sm:$0xff]
        %v1366 = vld [vmem:[#allocation2 + $0x190] sm:$0xff]
        %v1367 = vld [vmem:[#allocation2 + $0x198] sm:$0xff]
        %v1368 = vld [vmem:[#allocation2 + $0x1a0] sm:$0xff]
        %v1369 = vld [vmem:[#allocation2 + $0x1a8] sm:$0xff]
        %v1370 = vld [vmem:[#allocation2 + $0x1b0] sm:$0xff]
        %v1371 = vld [vmem:[#allocation2 + $0x1b8] sm:$0xff]
        %v1372 = vld [vmem:[%s295] sm:$0x1]
        %v1374 = vperm.slane %v1372, 0
        %v1376 = vmul.f32 %v1316, %v1374
        %v1377 = vmul.f32 %v1317, %v1374
        %v1378 = vmul.f32 %v1318, %v1374
        %v1379 = vmul.f32 %v1319, %v1374
        %v1380 = vmul.f32 %v1320, %v1374
        %v1381 = vmul.f32 %v1321, %v1374
        %v1382 = vmul.f32 %v1322, %v1374
        %v1383 = vmul.f32 %v1323, %v1374
        %v1384 = vmul.f32 %v1324, %v1374
        %v1385 = vmul.f32 %v1325, %v1374
        %v1386 = vmul.f32 %v1326, %v1374
        %v1387 = vmul.f32 %v1327, %v1374
        %v1388 = vmul.f32 %v1328, %v1374
        %v1389 = vmul.f32 %v1329, %v1374
        %v1390 = vmul.f32 %v1330, %v1374
        %v1391 = vmul.f32 %v1331, %v1374
        %v1392 = vmul.f32 %v1332, %v1374
        %v1393 = vmul.f32 %v1333, %v1374
        %v1394 = vmul.f32 %v1334, %v1374
        %v1395 = vmul.f32 %v1335, %v1374
        %v1396 = vmul.f32 %v1336, %v1374
        %v1397 = vmul.f32 %v1337, %v1374
        %v1398 = vmul.f32 %v1338, %v1374
        %v1399 = vmul.f32 %v1339, %v1374
        %v1400 = vmul.f32 %v1340, %v1374
        %v1401 = vmul.f32 %v1341, %v1374
        %v1402 = vmul.f32 %v1342, %v1374
        %v1403 = vmul.f32 %v1343, %v1374
        %v1404 = vmul.f32 %v1344, %v1374
        %v1405 = vmul.f32 %v1345, %v1374
        %v1406 = vmul.f32 %v1346, %v1374
        %v1407 = vmul.f32 %v1347, %v1374
        %v1408 = vmul.f32 %v1348, %v1374
        %v1409 = vmul.f32 %v1349, %v1374
        %v1410 = vmul.f32 %v1350, %v1374
        %v1411 = vmul.f32 %v1351, %v1374
        %v1412 = vmul.f32 %v1352, %v1374
        %v1413 = vmul.f32 %v1353, %v1374
        %v1414 = vmul.f32 %v1354, %v1374
        %v1415 = vmul.f32 %v1355, %v1374
        %v1416 = vmul.f32 %v1356, %v1374
        %v1417 = vmul.f32 %v1357, %v1374
        %v1418 = vmul.f32 %v1358, %v1374
        %v1419 = vmul.f32 %v1359, %v1374
        %v1420 = vmul.f32 %v1360, %v1374
        %v1421 = vmul.f32 %v1361, %v1374
        %v1422 = vmul.f32 %v1362, %v1374
        %v1423 = vmul.f32 %v1363, %v1374
        %v1424 = vmul.f32 %v1364, %v1374
        %v1425 = vmul.f32 %v1365, %v1374
        %v1426 = vmul.f32 %v1366, %v1374
        %v1427 = vmul.f32 %v1367, %v1374
        %v1428 = vmul.f32 %v1368, %v1374
        %v1429 = vmul.f32 %v1369, %v1374
        %v1430 = vmul.f32 %v1370, %v1374
        %v1431 = vmul.f32 %v1371, %v1374
        %v1432 = vld [vmem:[%s298] sm:$0x1]
        %v1434 = vperm.slane %v1432, 0
        %v1436 = vadd.f32 %v1376, %v1434
        %v1437 = vadd.f32 %v1377, %v1434
        %v1438 = vadd.f32 %v1378, %v1434
        %v1439 = vadd.f32 %v1379, %v1434
        %v1440 = vadd.f32 %v1380, %v1434
        %v1441 = vadd.f32 %v1381, %v1434
        %v1442 = vadd.f32 %v1382, %v1434
        %v1443 = vadd.f32 %v1383, %v1434
        %v1444 = vadd.f32 %v1384, %v1434
        %v1445 = vadd.f32 %v1385, %v1434
        %v1446 = vadd.f32 %v1386, %v1434
        %v1447 = vadd.f32 %v1387, %v1434
        %v1448 = vadd.f32 %v1388, %v1434
        %v1449 = vadd.f32 %v1389, %v1434
        %v1450 = vadd.f32 %v1390, %v1434
        %v1451 = vadd.f32 %v1391, %v1434
        %v1452 = vadd.f32 %v1392, %v1434
        %v1453 = vadd.f32 %v1393, %v1434
        %v1454 = vadd.f32 %v1394, %v1434
        %v1455 = vadd.f32 %v1395, %v1434
        %v1456 = vadd.f32 %v1396, %v1434
        %v1457 = vadd.f32 %v1397, %v1434
        %v1458 = vadd.f32 %v1398, %v1434
        %v1459 = vadd.f32 %v1399, %v1434
        %v1460 = vadd.f32 %v1400, %v1434
        %v1461 = vadd.f32 %v1401, %v1434
        %v1462 = vadd.f32 %v1402, %v1434
        %v1463 = vadd.f32 %v1403, %v1434
        %v1464 = vadd.f32 %v1404, %v1434
        %v1465 = vadd.f32 %v1405, %v1434
        %v1466 = vadd.f32 %v1406, %v1434
        %v1467 = vadd.f32 %v1407, %v1434
        %v1468 = vadd.f32 %v1408, %v1434
        %v1469 = vadd.f32 %v1409, %v1434
        %v1470 = vadd.f32 %v1410, %v1434
        %v1471 = vadd.f32 %v1411, %v1434
        %v1472 = vadd.f32 %v1412, %v1434
        %v1473 = vadd.f32 %v1413, %v1434
        %v1474 = vadd.f32 %v1414, %v1434
        %v1475 = vadd.f32 %v1415, %v1434
        %v1476 = vadd.f32 %v1416, %v1434
        %v1477 = vadd.f32 %v1417, %v1434
        %v1478 = vadd.f32 %v1418, %v1434
        %v1479 = vadd.f32 %v1419, %v1434
        %v1480 = vadd.f32 %v1420, %v1434
        %v1481 = vadd.f32 %v1421, %v1434
        %v1482 = vadd.f32 %v1422, %v1434
        %v1483 = vadd.f32 %v1423, %v1434
        %v1484 = vadd.f32 %v1424, %v1434
        %v1485 = vadd.f32 %v1425, %v1434
        %v1486 = vadd.f32 %v1426, %v1434
        %v1487 = vadd.f32 %v1427, %v1434
        %v1488 = vadd.f32 %v1428, %v1434
        %v1489 = vadd.f32 %v1429, %v1434
        %v1490 = vadd.f32 %v1430, %v1434
        %v1491 = vadd.f32 %v1431, %v1434
        %v1492 = vmax.f32 %v1436, 0.0
        %v1493 = vmax.f32 %v1437, 0.0
        %v1494 = vmax.f32 %v1438, 0.0
        %v1495 = vmax.f32 %v1439, 0.0
        %v1496 = vmax.f32 %v1440, 0.0
        %v1497 = vmax.f32 %v1441, 0.0
        %v1498 = vmax.f32 %v1442, 0.0
        %v1499 = vmax.f32 %v1443, 0.0
        %v1500 = vmax.f32 %v1444, 0.0
        %v1501 = vmax.f32 %v1445, 0.0
        %v1502 = vmax.f32 %v1446, 0.0
        %v1503 = vmax.f32 %v1447, 0.0
        %v1504 = vmax.f32 %v1448, 0.0
        %v1505 = vmax.f32 %v1449, 0.0
        %v1506 = vmax.f32 %v1450, 0.0
        %v1507 = vmax.f32 %v1451, 0.0
        %v1508 = vmax.f32 %v1452, 0.0
        %v1509 = vmax.f32 %v1453, 0.0
        %v1510 = vmax.f32 %v1454, 0.0
        %v1511 = vmax.f32 %v1455, 0.0
        %v1512 = vmax.f32 %v1456, 0.0
        %v1513 = vmax.f32 %v1457, 0.0
        %v1514 = vmax.f32 %v1458, 0.0
        %v1515 = vmax.f32 %v1459, 0.0
        %v1516 = vmax.f32 %v1460, 0.0
        %v1517 = vmax.f32 %v1461, 0.0
        %v1518 = vmax.f32 %v1462, 0.0
        %v1519 = vmax.f32 %v1463, 0.0
        %v1520 = vmax.f32 %v1464, 0.0
        %v1521 = vmax.f32 %v1465, 0.0
        %v1522 = vmax.f32 %v1466, 0.0
        %v1523 = vmax.f32 %v1467, 0.0
        %v1524 = vmax.f32 %v1468, 0.0
        %v1525 = vmax.f32 %v1469, 0.0
        %v1526 = vmax.f32 %v1470, 0.0
        %v1527 = vmax.f32 %v1471, 0.0
        %v1528 = vmax.f32 %v1472, 0.0
        %v1529 = vmax.f32 %v1473, 0.0
        %v1530 = vmax.f32 %v1474, 0.0
        %v1531 = vmax.f32 %v1475, 0.0
        %v1532 = vmax.f32 %v1476, 0.0
        %v1533 = vmax.f32 %v1477, 0.0
        %v1534 = vmax.f32 %v1478, 0.0
        %v1535 = vmax.f32 %v1479, 0.0
        %v1536 = vmax.f32 %v1480, 0.0
        %v1537 = vmax.f32 %v1481, 0.0
        %v1538 = vmax.f32 %v1482, 0.0
        %v1539 = vmax.f32 %v1483, 0.0
        %v1540 = vmax.f32 %v1484, 0.0
        %v1541 = vmax.f32 %v1485, 0.0
        %v1542 = vmax.f32 %v1486, 0.0
        %v1543 = vmax.f32 %v1487, 0.0
        %v1544 = vmax.f32 %v1488, 0.0
        %v1545 = vmax.f32 %v1489, 0.0
        %v1546 = vmax.f32 %v1490, 0.0
        %v1547 = vmax.f32 %v1491, 0.0
        %v1548 = vpack.c.bf16 %v1492, %v1492
        %v1549 = vpack.c.bf16 %v1493, %v1493
        %v1550 = vpack.c.bf16 %v1494, %v1494
        %v1551 = vpack.c.bf16 %v1495, %v1495
        %v1552 = vpack.c.bf16 %v1496, %v1496
        %v1553 = vpack.c.bf16 %v1497, %v1497
        %v1554 = vpack.c.bf16 %v1498, %v1498
        %v1555 = vpack.c.bf16 %v1499, %v1499
        %v1556 = vpack.c.bf16 %v1500, %v1500
        %v1557 = vpack.c.bf16 %v1501, %v1501
        %v1558 = vpack.c.bf16 %v1502, %v1502
        %v1559 = vpack.c.bf16 %v1503, %v1503
        %v1560 = vpack.c.bf16 %v1504, %v1504
        %v1561 = vpack.c.bf16 %v1505, %v1505
        %v1562 = vpack.c.bf16 %v1506, %v1506
        %v1563 = vpack.c.bf16 %v1507, %v1507
        %v1564 = vpack.c.bf16 %v1508, %v1508
        %v1565 = vpack.c.bf16 %v1509, %v1509
        %v1566 = vpack.c.bf16 %v1510, %v1510
        %v1567 = vpack.c.bf16 %v1511, %v1511
        %v1568 = vpack.c.bf16 %v1512, %v1512
        %v1569 = vpack.c.bf16 %v1513, %v1513
        %v1570 = vpack.c.bf16 %v1514, %v1514
        %v1571 = vpack.c.bf16 %v1515, %v1515
        %v1572 = vpack.c.bf16 %v1516, %v1516
        %v1573 = vpack.c.bf16 %v1517, %v1517
        %v1574 = vpack.c.bf16 %v1518, %v1518
        %v1575 = vpack.c.bf16 %v1519, %v1519
        %v1576 = vpack.c.bf16 %v1520, %v1520
        %v1577 = vpack.c.bf16 %v1521, %v1521
        %v1578 = vpack.c.bf16 %v1522, %v1522
        %v1579 = vpack.c.bf16 %v1523, %v1523
        %v1580 = vpack.c.bf16 %v1524, %v1524
        %v1581 = vpack.c.bf16 %v1525, %v1525
        %v1582 = vpack.c.bf16 %v1526, %v1526
        %v1583 = vpack.c.bf16 %v1527, %v1527
        %v1584 = vpack.c.bf16 %v1528, %v1528
        %v1585 = vpack.c.bf16 %v1529, %v1529
        %v1586 = vpack.c.bf16 %v1530, %v1530
        %v1587 = vpack.c.bf16 %v1531, %v1531
        %v1588 = vpack.c.bf16 %v1532, %v1532
        %v1589 = vpack.c.bf16 %v1533, %v1533
        %v1590 = vpack.c.bf16 %v1534, %v1534
        %v1591 = vpack.c.bf16 %v1535, %v1535
        %v1592 = vpack.c.bf16 %v1536, %v1536
        %v1593 = vpack.c.bf16 %v1537, %v1537
        %v1594 = vpack.c.bf16 %v1538, %v1538
        %v1595 = vpack.c.bf16 %v1539, %v1539
        %v1596 = vpack.c.bf16 %v1540, %v1540
        %v1597 = vpack.c.bf16 %v1541, %v1541
        %v1598 = vpack.c.bf16 %v1542, %v1542
        %v1599 = vpack.c.bf16 %v1543, %v1543
        %v1600 = vpack.c.bf16 %v1544, %v1544
        %v1601 = vpack.c.bf16 %v1545, %v1545
        %v1602 = vpack.c.bf16 %v1546, %v1546
        %v1603 = vpack.c.bf16 %v1547, %v1547
        %vm1604 = vcmask 519168
        %1605 = vst.msk [vmem:[%s306] sm:$0xf] %vm1604, %v1548
        %1606 = vst.msk [vmem:[%s306 + $0x4] sm:$0xf] %vm1604, %v1549
        %1607 = vst.msk [vmem:[%s306 + $0x8] sm:$0xf] %vm1604, %v1550
        %1608 = vst.msk [vmem:[%s306 + $0xc] sm:$0xf] %vm1604, %v1551
        %1609 = vst.msk [vmem:[%s306 + $0x10] sm:$0xf] %vm1604, %v1552
        %1610 = vst.msk [vmem:[%s306 + $0x14] sm:$0xf] %vm1604, %v1553
        %1611 = vst.msk [vmem:[%s306 + $0x18] sm:$0xf] %vm1604, %v1554
        %1612 = vst.msk [vmem:[%s306 + $0x1c] sm:$0xf] %vm1604, %v1555
        %1613 = vst.msk [vmem:[%s306 + $0x20] sm:$0xf] %vm1604, %v1556
        %1614 = vst.msk [vmem:[%s306 + $0x24] sm:$0xf] %vm1604, %v1557
        %1615 = vst.msk [vmem:[%s306 + $0x28] sm:$0xf] %vm1604, %v1558
        %1616 = vst.msk [vmem:[%s306 + $0x2c] sm:$0xf] %vm1604, %v1559
        %1617 = vst.msk [vmem:[%s306 + $0x30] sm:$0xf] %vm1604, %v1560
        %1618 = vst.msk [vmem:[%s306 + $0x34] sm:$0xf] %vm1604, %v1561
        %1619 = vst.msk [vmem:[%s306 + $0x38] sm:$0xf] %vm1604, %v1562
        %1620 = vst.msk [vmem:[%s306 + $0x3c] sm:$0xf] %vm1604, %v1563
        %1621 = vst.msk [vmem:[%s306 + $0x40] sm:$0xf] %vm1604, %v1564
        %1622 = vst.msk [vmem:[%s306 + $0x44] sm:$0xf] %vm1604, %v1565
        %1623 = vst.msk [vmem:[%s306 + $0x48] sm:$0xf] %vm1604, %v1566
        %1624 = vst.msk [vmem:[%s306 + $0x4c] sm:$0xf] %vm1604, %v1567
        %1625 = vst.msk [vmem:[%s306 + $0x50] sm:$0xf] %vm1604, %v1568
        %1626 = vst.msk [vmem:[%s306 + $0x54] sm:$0xf] %vm1604, %v1569
        %1627 = vst.msk [vmem:[%s306 + $0x58] sm:$0xf] %vm1604, %v1570
        %1628 = vst.msk [vmem:[%s306 + $0x5c] sm:$0xf] %vm1604, %v1571
        %1629 = vst.msk [vmem:[%s306 + $0x60] sm:$0xf] %vm1604, %v1572
        %1630 = vst.msk [vmem:[%s306 + $0x64] sm:$0xf] %vm1604, %v1573
        %1631 = vst.msk [vmem:[%s306 + $0x68] sm:$0xf] %vm1604, %v1574
        %1632 = vst.msk [vmem:[%s306 + $0x6c] sm:$0xf] %vm1604, %v1575
        %1633 = vst.msk [vmem:[%s306 + $0x70] sm:$0xf] %vm1604, %v1576
        %1634 = vst.msk [vmem:[%s306 + $0x74] sm:$0xf] %vm1604, %v1577
        %1635 = vst.msk [vmem:[%s306 + $0x78] sm:$0xf] %vm1604, %v1578
        %1636 = vst.msk [vmem:[%s306 + $0x7c] sm:$0xf] %vm1604, %v1579
        %1637 = vst.msk [vmem:[%s306 + $0x80] sm:$0xf] %vm1604, %v1580
        %1638 = vst.msk [vmem:[%s306 + $0x84] sm:$0xf] %vm1604, %v1581
        %1639 = vst.msk [vmem:[%s306 + $0x88] sm:$0xf] %vm1604, %v1582
        %1640 = vst.msk [vmem:[%s306 + $0x8c] sm:$0xf] %vm1604, %v1583
        %1641 = vst.msk [vmem:[%s306 + $0x90] sm:$0xf] %vm1604, %v1584
        %1642 = vst.msk [vmem:[%s306 + $0x94] sm:$0xf] %vm1604, %v1585
        %1643 = vst.msk [vmem:[%s306 + $0x98] sm:$0xf] %vm1604, %v1586
        %1644 = vst.msk [vmem:[%s306 + $0x9c] sm:$0xf] %vm1604, %v1587
        %1645 = vst.msk [vmem:[%s306 + $0xa0] sm:$0xf] %vm1604, %v1588
        %1646 = vst.msk [vmem:[%s306 + $0xa4] sm:$0xf] %vm1604, %v1589
        %1647 = vst.msk [vmem:[%s306 + $0xa8] sm:$0xf] %vm1604, %v1590
        %1648 = vst.msk [vmem:[%s306 + $0xac] sm:$0xf] %vm1604, %v1591
        %1649 = vst.msk [vmem:[%s306 + $0xb0] sm:$0xf] %vm1604, %v1592
        %1650 = vst.msk [vmem:[%s306 + $0xb4] sm:$0xf] %vm1604, %v1593
        %1651 = vst.msk [vmem:[%s306 + $0xb8] sm:$0xf] %vm1604, %v1594
        %1652 = vst.msk [vmem:[%s306 + $0xbc] sm:$0xf] %vm1604, %v1595
        %1653 = vst.msk [vmem:[%s306 + $0xc0] sm:$0xf] %vm1604, %v1596
        %1654 = vst.msk [vmem:[%s306 + $0xc4] sm:$0xf] %vm1604, %v1597
        %1655 = vst.msk [vmem:[%s306 + $0xc8] sm:$0xf] %vm1604, %v1598
        %1656 = vst.msk [vmem:[%s306 + $0xcc] sm:$0xf] %vm1604, %v1599
        %1657 = vst.msk [vmem:[%s306 + $0xd0] sm:$0xf] %vm1604, %v1600
        %1658 = vst.msk [vmem:[%s306 + $0xd4] sm:$0xf] %vm1604, %v1601
        %1659 = vst.msk [vmem:[%s306 + $0xd8] sm:$0xf] %vm1604, %v1602
        %1660 = vst.msk [vmem:[%s306 + $0xdc] sm:$0xf] %vm1604, %v1603
      $region44: #{stem_conv_bn.1} parent=35 // pred_fallthru
        _
      %s1661 = smul.u32 56, %s20
      %p1662 = scmp.lt.s32.totalorder %s1661, 1567
      %s1663 = scalar_select %p1662, %s1661, 1567
      %p1664 = scmp.lt.s32.totalorder %s21, 0
      %s1665 = scalar_select %p1664, %s21, 0
      %s1666 = sadd.s32 %s1665, %s1663
      %s1667 = smul.addr %s1666, 4
      %s1668 = scalar_lea.vmem %s4, %s1667
      // Predicated region
      $region45: #{stem_conv_bn.1} parent=35 // pred_check
        %p1669 = pneg %p162
      $region46: #{stem_conv_bn.1} parent=35 // pred_check_branch
        %1671 = sbr.rel (%p1669) target = $region48
      $region47: #{stem_conv_bn.1} parent=35 // pred_region
        %s1672 = smul.u32 56, %s20
      $region48: #{stem_conv_bn.1} parent=35 // pred_fallthru
        _
    $region36: #{stem_conv_bn.1} parent=5 // pred_fallthru
      _
    %p1673 = scmp.le.s32.totalorder 2, %s10
    // Predicated region
    $region49: #{stem_conv_bn.1} parent=5 // pred_check
      %p1674 = pneg %p1673
    $region50: #{stem_conv_bn.1} parent=5 // pred_check_branch
      %1676 = sbr.rel (%p1674) target = $region52
    $region51: #{stem_conv_bn.1} parent=5 // pred_region
      %s1677 = ssub.s32 %s10, 2
      // Predicated region
      $region53: #{stem_conv_bn.1} parent=51 // pred_check
        %p1678 = pneg %p168
      $region54: #{stem_conv_bn.1} parent=51 // pred_check_branch
        %1680 = sbr.rel (%p1678) target = $region56
      $region55: #{stem_conv_bn.1} parent=51 // pred_region
        %s1681 = smul.u32 56, %s23
        %p1682 = scmp.lt.s32.totalorder %s1681, 1567
        %s1683 = scalar_select %p1682, %s1681, 1567
        %p1684 = scmp.lt.s32.totalorder %s24, 0
        %s1685 = scalar_select %p1684, %s24, 0
        %s1686 = sadd.s32 %s1685, %s1683
        %s1687 = smul.addr %s1686, 4
        %s1688 = scalar_lea.vmem %s4, %s1687
      $region56: #{stem_conv_bn.1} parent=51 // pred_fallthru
        _
    $region52: #{stem_conv_bn.1} parent=5 // pred_fallthru
      _
  $region6: #{stem_conv_bn.1} parent=0 // loop_footer
    %s14 = sadd.s32 1, %s10
  $region7: #{stem_conv_bn.1} parent=0 // loop_footer_branch
    %9 = sbr.rel target = $region3
  $region8: #{stem_conv_bn.1} parent=0 // loop_exit
    _

</llo_original>
